<compile_context>
chip_gen: v7x
topology: tpu7x:2x2x1
jax: 0.10.0
libtpu: 0.0.40
codegen_flags: <defaults>
</compile_context>

<pallas_src>
import numpy as np
import jax
import jax.numpy as jnp
from jax import lax
from jax.experimental import pallas as pl
from jax.experimental.pallas import tpu as pltpu

EPS = 1e-5  # nn.BatchNorm2d default eps


def encoderv3_forward(x_nchw, params):
    """params = (w1, g1, b1, w2, g2, b2, w3, g3, b3); conv weights in HWIO (3,3,Ci,Co)."""
    w1, g1, b1, w2, g2, b2, w3, g3, b3 = params
    N, Cin, H, W = x_nchw.shape
    Cout = w1.shape[-1]
    NH = N * H
    WCo = W * Cout
    f32 = jnp.float32
    inv_count = 1.0 / float(N * H * W)

    # ---- wrapper-side layout / weight preprocessing (all tiny) -------------------------------
    # NCHW -> lane-dense 2-D layout (N*H, W*Cin); [n*H+h, w*Cin+c] = x[n, c, h, w].
    x2d = jnp.transpose(x_nchw, (0, 2, 3, 1)).astype(f32).reshape(NH, W * Cin)

    # Banded matrices for the W-direction taps + channel mixing.
    # band[dy][w'*Ci+ci, w*Co+co] = K[dy, w'-w+1, ci, co] (zero outside the 3-wide band, which
    # also implements the zero padding along W).
    def band(w_hwio):
        Ci, Co = w_hwio.shape[2], w_hwio.shape[3]
        eyes = jnp.stack([jnp.eye(W, k=1 - dx, dtype=f32) for dx in range(3)])   # (3, W, W)
        prod = (eyes[None, :, :, None, :, None] *                                 # (dy,dx,w',ci,w,co)
                w_hwio.astype(f32)[:, :, None, :, None, :])
        return jnp.sum(prod, axis=1).reshape(3, W * Ci, W * Co)

    # Boundary masks for the vertical rolls: zero the rows whose roll wrapped across an image
    # top/bottom edge (this also covers the batch-image seams in the flattened NH axis).
    h_idx = jnp.arange(NH) % H
    masks = jnp.stack([(h_idx != 0).astype(f32).reshape(NH, 1),       # valid "row above"
                       (h_idx != H - 1).astype(f32).reshape(NH, 1)],  # valid "row below"
                      axis=0)                                         # (2, NH, 1)

    # 0/1 channel-fold matrix for BN stats: (v @ P)[w*Co+c] = sum_{w'} v[w'*Co+c].
    c_idx = jnp.arange(WCo) % Cout
    p_mat = (c_idx[:, None] == c_idx[None, :]).astype(f32)            # (WCo, WCo)

    # BN affine params packed per stage: gb[s, 0] = gamma row, gb[s, 1] = beta row, each (WCo,).
    def tile_row(v):
        return jnp.tile(v.reshape(1, Cout).astype(f32), (1, W))
    gb = jnp.stack([jnp.concatenate([tile_row(g), tile_row(b)], axis=0)
                    for g, b in ((g1, b1), (g2, b2), (g3, b3))], axis=0)   # (3, 2, WCo)

    # ---- the kernel ---------------------------------------------------------------------------
    def kernel(x_ref, m_ref, p_ref, gb_ref, c1_ref, c2_ref, c3_ref, o_ref):

        def stage(x, band_ref, s):
            # Conv3x3(pad=1): vertical taps via XLU sublane rolls + boundary masks (no shift
            # matmuls); horizontal taps + channel mixing via 3 banded MXU matmuls (accumulation
            # chain), output directly in the lane-dense (NH, W*Co) layout.
            x_up = pltpu.roll(x, shift=1, axis=0) * m_ref[0]         # x[i-1], masked at h==0
            x_dn = pltpu.roll(x, shift=NH - 1, axis=0) * m_ref[1]    # x[i+1], masked at h==H-1
            y = jnp.dot(x_up, band_ref[0], preferred_element_type=jnp.float32)
            y = y + jnp.dot(x, band_ref[1], preferred_element_type=jnp.float32)
            y = y + jnp.dot(x_dn, band_ref[2], preferred_element_type=jnp.float32)

            # BatchNorm (training mode: batch mean, biased variance), fused in one pass.
            # Sublane reductions first, then a single tiny (2, WCo) @ (WCo, WCo) fold matmul.
            s1 = jnp.sum(y, axis=0, keepdims=True)
            s2 = jnp.sum(y * y, axis=0, keepdims=True)
            stats = jnp.dot(jnp.concatenate([s1, s2], axis=0), p_ref[...],
                            preferred_element_type=jnp.float32)       # (2, WCo)
            mean = stats[0:1, :] * inv_count
            var = jnp.maximum(stats[1:2, :] * inv_count - mean * mean, 0.0)  # clamp cancellation
            gbs = gb_ref[s]                                            # (2, WCo): gamma, beta
            scale = gbs[0:1, :] * lax.rsqrt(var + EPS)
            shift = gbs[1:2, :] - mean * scale
            return jnp.maximum(y * scale + shift, 0.0)                 # ReLU, lane-dense VPU

        h1 = stage(x_ref[...], c1_ref, 0)
        h2 = stage(h1, c2_ref, 1)
        o_ref[...] = stage(h2, c3_ref, 2)                              # stage-3 written straight out

    vmem = pl.BlockSpec(memory_space=pltpu.MemorySpace.VMEM)
    out2d = pl.pallas_call(
        kernel,
        out_shape=jax.ShapeDtypeStruct((NH, WCo), jnp.float32),
        in_specs=[vmem] * 7,
        out_specs=vmem,
        compiler_params=pltpu.CompilerParams(
            # Footprint is well under 1 MiB at test shapes; 32 MiB stays below every
            # generation's physical VMEM (v7x: 64 MiB).
            vmem_limit_bytes=32 * 1024 * 1024),
    )(x2d, masks, p_mat, gb, band(w1), band(w2), band(w3))

    out = out2d.reshape(N, H, W, Cout)
    return jnp.transpose(out, (0, 3, 1, 2))  # NHWC -> NCHW (module contract)


def encoderv3_reference(x_nchw, params):
    """Pure-JAX reference (lax conv) with identical semantics, for validation."""
    w1, g1, b1, w2, g2, b2, w3, g3, b3 = params
    x = jnp.transpose(x_nchw, (0, 2, 3, 1)).astype(jnp.float32)

    def block(h, w, g, b):
        y = lax.conv_general_dilated(
            h, w, window_strides=(1, 1), padding="SAME",
            dimension_numbers=("NHWC", "HWIO", "NHWC"),
            precision=lax.Precision.HIGHEST)
        m = jnp.mean(y, axis=(0, 1, 2), keepdims=True)
        v = jnp.mean((y - m) ** 2, axis=(0, 1, 2), keepdims=True)
        y = (y - m) * lax.rsqrt(v + EPS) * g.reshape(1, 1, 1, -1) + b.reshape(1, 1, 1, -1)
        return jnp.maximum(y, 0.0)

    h = block(x, w1, g1, b1)
    h = block(h, w2, g2, b2)
    h = block(h, w3, g3, b3)
    return jnp.transpose(h, (0, 3, 1, 2))


if __name__ == "__main__":
    N, Cin, Cout, H, W = 2, 4, 8, 16, 16

    key = jax.random.PRNGKey(0)
    kx, k1, k2, k3 = jax.random.split(key, 4)
    x = jax.random.normal(kx, (N, Cin, H, W), jnp.float32)

    # Deterministic synthetic parameters (conv weights in HWIO; BN affine at PyTorch init).
    w1 = jax.random.normal(k1, (3, 3, Cin, Cout), jnp.float32) * 0.1
    w2 = jax.random.normal(k2, (3, 3, Cout, Cout), jnp.float32) * 0.1
    w3 = jax.random.normal(k3, (3, 3, Cout, Cout), jnp.float32) * 0.1
    gamma = jnp.ones((1, Cout), jnp.float32)
    beta = jnp.zeros((1, Cout), jnp.float32)
    params = (w1, gamma, beta, w2, gamma, beta, w3, gamma, beta)

    out = jax.block_until_ready(encoderv3_forward(x, params))
    ref = jax.block_until_ready(encoderv3_reference(x, params))

    assert out.shape == (N, Cout, H, W), out.shape
    np.testing.assert_allclose(np.asarray(out), np.asarray(ref), rtol=5e-4, atol=5e-4)
    print("KERNEL_OK")
</pallas_src>

<mosaic_0001>
module attributes {stable_mosaic.version = 11 : i64} {
  func.func @kernel(%arg0: memref<32x64xf32, #tpu.memory_space<vmem>>, %arg1: memref<2x32x1xf32, #tpu.memory_space<vmem>>, %arg2: memref<128x128xf32, #tpu.memory_space<vmem>>, %arg3: memref<3x2x128xf32, #tpu.memory_space<vmem>>, %arg4: memref<3x64x128xf32, #tpu.memory_space<vmem>>, %arg5: memref<3x128x128xf32, #tpu.memory_space<vmem>>, %arg6: memref<3x128x128xf32, #tpu.memory_space<vmem>>, %arg7: memref<32x128xf32, #tpu.memory_space<vmem>>) attributes {dimension_semantics = [], scalar_prefetch = 0 : i64, scratch_operands = 0 : i64, tpu.core_type = #tpu.core_type<tc>} {
    %c0 = arith.constant 0 : index
    %c0_0 = arith.constant 0 : index
    %0 = vector.load %arg0[%c0, %c0_0] : memref<32x64xf32, #tpu.memory_space<vmem>>, vector<32x64xf32>
    %c1_i32 = arith.constant 1 : i32
    %1 = tpu.dynamic_rotate %0 by %c1_i32 dim 0 : vector<32x64xf32>, i32 -> vector<32x64xf32>
    %c0_1 = arith.constant 0 : index
    %c0_2 = arith.constant 0 : index
    %c0_3 = arith.constant 0 : index
    %2 = vector.load %arg1[%c0_1, %c0_2, %c0_3] : memref<2x32x1xf32, #tpu.memory_space<vmem>>, vector<1x32x1xf32>
    %3 = vector.shape_cast %2 : vector<1x32x1xf32> to vector<32x1xf32>
    %4 = vector.broadcast %3 : vector<32x1xf32> to vector<32x64xf32>
    %5 = arith.mulf %1, %4 : vector<32x64xf32>
    %c31_i32 = arith.constant 31 : i32
    %6 = tpu.dynamic_rotate %0 by %c31_i32 dim 0 : vector<32x64xf32>, i32 -> vector<32x64xf32>
    %c1 = arith.constant 1 : index
    %c0_4 = arith.constant 0 : index
    %c0_5 = arith.constant 0 : index
    %7 = vector.load %arg1[%c1, %c0_4, %c0_5] : memref<2x32x1xf32, #tpu.memory_space<vmem>>, vector<1x32x1xf32>
    %8 = vector.shape_cast %7 : vector<1x32x1xf32> to vector<32x1xf32>
    %9 = vector.broadcast %8 : vector<32x1xf32> to vector<32x64xf32>
    %10 = arith.mulf %6, %9 : vector<32x64xf32>
    %c0_6 = arith.constant 0 : index
    %c0_7 = arith.constant 0 : index
    %c0_8 = arith.constant 0 : index
    %11 = vector.load %arg4[%c0_6, %c0_7, %c0_8] : memref<3x64x128xf32, #tpu.memory_space<vmem>>, vector<1x64x128xf32>
    %12 = vector.shape_cast %11 : vector<1x64x128xf32> to vector<64x128xf32>
    %cst = arith.constant dense<0.000000e+00> : vector<32x128xf32>
    %13 = tpu.matmul %5, %12, %cst {dimension_numbers = #tpu.dot_dimension_numbers<[1], [0], [0], [1], [0, 0, 1, 1], [], []>} : vector<32x64xf32>, vector<64x128xf32>, vector<32x128xf32> -> vector<32x128xf32>
    %c1_9 = arith.constant 1 : index
    %c0_10 = arith.constant 0 : index
    %c0_11 = arith.constant 0 : index
    %14 = vector.load %arg4[%c1_9, %c0_10, %c0_11] : memref<3x64x128xf32, #tpu.memory_space<vmem>>, vector<1x64x128xf32>
    %15 = vector.shape_cast %14 : vector<1x64x128xf32> to vector<64x128xf32>
    %cst_12 = arith.constant dense<0.000000e+00> : vector<32x128xf32>
    %16 = tpu.matmul %0, %15, %cst_12 {dimension_numbers = #tpu.dot_dimension_numbers<[1], [0], [0], [1], [0, 0, 1, 1], [], []>} : vector<32x64xf32>, vector<64x128xf32>, vector<32x128xf32> -> vector<32x128xf32>
    %17 = arith.addf %13, %16 : vector<32x128xf32>
    %c2 = arith.constant 2 : index
    %c0_13 = arith.constant 0 : index
    %c0_14 = arith.constant 0 : index
    %18 = vector.load %arg4[%c2, %c0_13, %c0_14] : memref<3x64x128xf32, #tpu.memory_space<vmem>>, vector<1x64x128xf32>
    %19 = vector.shape_cast %18 : vector<1x64x128xf32> to vector<64x128xf32>
    %cst_15 = arith.constant dense<0.000000e+00> : vector<32x128xf32>
    %20 = tpu.matmul %10, %19, %cst_15 {dimension_numbers = #tpu.dot_dimension_numbers<[1], [0], [0], [1], [0, 0, 1, 1], [], []>} : vector<32x64xf32>, vector<64x128xf32>, vector<32x128xf32> -> vector<32x128xf32>
    %21 = arith.addf %17, %20 : vector<32x128xf32>
    %cst_16 = arith.constant dense<0.000000e+00> : vector<128xf32>
    %22 = vector.multi_reduction <add>, %21, %cst_16 [0] : vector<32x128xf32> to vector<128xf32>
    %23 = vector.shape_cast %22 : vector<128xf32> to vector<1x128xf32>
    %24 = arith.mulf %21, %21 : vector<32x128xf32>
    %cst_17 = arith.constant dense<0.000000e+00> : vector<128xf32>
    %25 = vector.multi_reduction <add>, %24, %cst_17 [0] : vector<32x128xf32> to vector<128xf32>
    %26 = vector.shape_cast %25 : vector<128xf32> to vector<1x128xf32>
    %27 = tpu.concatenate %23, %26 in 0 : vector<1x128xf32>, vector<1x128xf32> -> vector<2x128xf32>
    %c0_18 = arith.constant 0 : index
    %c0_19 = arith.constant 0 : index
    %28 = vector.load %arg2[%c0_18, %c0_19] : memref<128x128xf32, #tpu.memory_space<vmem>>, vector<128x128xf32>
    %cst_20 = arith.constant dense<0.000000e+00> : vector<2x128xf32>
    %29 = tpu.matmul %27, %28, %cst_20 {dimension_numbers = #tpu.dot_dimension_numbers<[1], [0], [0], [1], [0, 0, 1, 1], [], []>} : vector<2x128xf32>, vector<128x128xf32>, vector<2x128xf32> -> vector<2x128xf32>
    %30 = vector.extract_strided_slice %29 {offsets = [0, 0], sizes = [1, 128], strides = [1, 1]} : vector<2x128xf32> to vector<1x128xf32>
    %cst_21 = arith.constant 0.001953125 : f32
    %31 = vector.broadcast %cst_21 : f32 to vector<1x128xf32>
    %32 = arith.mulf %30, %31 : vector<1x128xf32>
    %33 = vector.extract_strided_slice %29 {offsets = [1, 0], sizes = [1, 128], strides = [1, 1]} : vector<2x128xf32> to vector<1x128xf32>
    %cst_22 = arith.constant 0.001953125 : f32
    %34 = vector.broadcast %cst_22 : f32 to vector<1x128xf32>
    %35 = arith.mulf %33, %34 : vector<1x128xf32>
    %36 = arith.mulf %32, %32 : vector<1x128xf32>
    %37 = arith.subf %35, %36 : vector<1x128xf32>
    %cst_23 = arith.constant 0.000000e+00 : f32
    %38 = vector.broadcast %cst_23 : f32 to vector<1x128xf32>
    %39 = arith.maximumf %37, %38 : vector<1x128xf32>
    %c0_24 = arith.constant 0 : index
    %c0_25 = arith.constant 0 : index
    %c0_26 = arith.constant 0 : index
    %40 = vector.load %arg3[%c0_24, %c0_25, %c0_26] : memref<3x2x128xf32, #tpu.memory_space<vmem>>, vector<1x2x128xf32>
    %41 = vector.shape_cast %40 : vector<1x2x128xf32> to vector<2x128xf32>
    %42 = vector.extract_strided_slice %41 {offsets = [0, 0], sizes = [1, 128], strides = [1, 1]} : vector<2x128xf32> to vector<1x128xf32>
    %cst_27 = arith.constant 9.99999974E-6 : f32
    %43 = vector.broadcast %cst_27 : f32 to vector<1x128xf32>
    %44 = arith.addf %39, %43 : vector<1x128xf32>
    %45 = math.rsqrt %44 : vector<1x128xf32>
    %46 = arith.mulf %42, %45 : vector<1x128xf32>
    %47 = vector.extract_strided_slice %41 {offsets = [1, 0], sizes = [1, 128], strides = [1, 1]} : vector<2x128xf32> to vector<1x128xf32>
    %48 = arith.mulf %32, %46 : vector<1x128xf32>
    %49 = arith.subf %47, %48 : vector<1x128xf32>
    %50 = vector.broadcast %46 : vector<1x128xf32> to vector<32x128xf32>
    %51 = arith.mulf %21, %50 : vector<32x128xf32>
    %52 = vector.broadcast %49 : vector<1x128xf32> to vector<32x128xf32>
    %53 = arith.addf %51, %52 : vector<32x128xf32>
    %cst_28 = arith.constant 0.000000e+00 : f32
    %54 = vector.broadcast %cst_28 : f32 to vector<32x128xf32>
    %55 = arith.maximumf %53, %54 : vector<32x128xf32>
    %c1_i32_29 = arith.constant 1 : i32
    %56 = tpu.dynamic_rotate %55 by %c1_i32_29 dim 0 : vector<32x128xf32>, i32 -> vector<32x128xf32>
    %c0_30 = arith.constant 0 : index
    %c0_31 = arith.constant 0 : index
    %c0_32 = arith.constant 0 : index
    %57 = vector.load %arg1[%c0_30, %c0_31, %c0_32] : memref<2x32x1xf32, #tpu.memory_space<vmem>>, vector<1x32x1xf32>
    %58 = vector.shape_cast %57 : vector<1x32x1xf32> to vector<32x1xf32>
    %59 = vector.broadcast %58 : vector<32x1xf32> to vector<32x128xf32>
    %60 = arith.mulf %56, %59 : vector<32x128xf32>
    %c31_i32_33 = arith.constant 31 : i32
    %61 = tpu.dynamic_rotate %55 by %c31_i32_33 dim 0 : vector<32x128xf32>, i32 -> vector<32x128xf32>
    %c1_34 = arith.constant 1 : index
    %c0_35 = arith.constant 0 : index
    %c0_36 = arith.constant 0 : index
    %62 = vector.load %arg1[%c1_34, %c0_35, %c0_36] : memref<2x32x1xf32, #tpu.memory_space<vmem>>, vector<1x32x1xf32>
    %63 = vector.shape_cast %62 : vector<1x32x1xf32> to vector<32x1xf32>
    %64 = vector.broadcast %63 : vector<32x1xf32> to vector<32x128xf32>
    %65 = arith.mulf %61, %64 : vector<32x128xf32>
    %c0_37 = arith.constant 0 : index
    %c0_38 = arith.constant 0 : index
    %c0_39 = arith.constant 0 : index
    %66 = vector.load %arg5[%c0_37, %c0_38, %c0_39] : memref<3x128x128xf32, #tpu.memory_space<vmem>>, vector<1x128x128xf32>
    %67 = vector.shape_cast %66 : vector<1x128x128xf32> to vector<128x128xf32>
    %cst_40 = arith.constant dense<0.000000e+00> : vector<32x128xf32>
    %68 = tpu.matmul %60, %67, %cst_40 {dimension_numbers = #tpu.dot_dimension_numbers<[1], [0], [0], [1], [0, 0, 1, 1], [], []>} : vector<32x128xf32>, vector<128x128xf32>, vector<32x128xf32> -> vector<32x128xf32>
    %c1_41 = arith.constant 1 : index
    %c0_42 = arith.constant 0 : index
    %c0_43 = arith.constant 0 : index
    %69 = vector.load %arg5[%c1_41, %c0_42, %c0_43] : memref<3x128x128xf32, #tpu.memory_space<vmem>>, vector<1x128x128xf32>
    %70 = vector.shape_cast %69 : vector<1x128x128xf32> to vector<128x128xf32>
    %cst_44 = arith.constant dense<0.000000e+00> : vector<32x128xf32>
    %71 = tpu.matmul %55, %70, %cst_44 {dimension_numbers = #tpu.dot_dimension_numbers<[1], [0], [0], [1], [0, 0, 1, 1], [], []>} : vector<32x128xf32>, vector<128x128xf32>, vector<32x128xf32> -> vector<32x128xf32>
    %72 = arith.addf %68, %71 : vector<32x128xf32>
    %c2_45 = arith.constant 2 : index
    %c0_46 = arith.constant 0 : index
    %c0_47 = arith.constant 0 : index
    %73 = vector.load %arg5[%c2_45, %c0_46, %c0_47] : memref<3x128x128xf32, #tpu.memory_space<vmem>>, vector<1x128x128xf32>
    %74 = vector.shape_cast %73 : vector<1x128x128xf32> to vector<128x128xf32>
    %cst_48 = arith.constant dense<0.000000e+00> : vector<32x128xf32>
    %75 = tpu.matmul %65, %74, %cst_48 {dimension_numbers = #tpu.dot_dimension_numbers<[1], [0], [0], [1], [0, 0, 1, 1], [], []>} : vector<32x128xf32>, vector<128x128xf32>, vector<32x128xf32> -> vector<32x128xf32>
    %76 = arith.addf %72, %75 : vector<32x128xf32>
    %cst_49 = arith.constant dense<0.000000e+00> : vector<128xf32>
    %77 = vector.multi_reduction <add>, %76, %cst_49 [0] : vector<32x128xf32> to vector<128xf32>
    %78 = vector.shape_cast %77 : vector<128xf32> to vector<1x128xf32>
    %79 = arith.mulf %76, %76 : vector<32x128xf32>
    %cst_50 = arith.constant dense<0.000000e+00> : vector<128xf32>
    %80 = vector.multi_reduction <add>, %79, %cst_50 [0] : vector<32x128xf32> to vector<128xf32>
    %81 = vector.shape_cast %80 : vector<128xf32> to vector<1x128xf32>
    %82 = tpu.concatenate %78, %81 in 0 : vector<1x128xf32>, vector<1x128xf32> -> vector<2x128xf32>
    %c0_51 = arith.constant 0 : index
    %c0_52 = arith.constant 0 : index
    %83 = vector.load %arg2[%c0_51, %c0_52] : memref<128x128xf32, #tpu.memory_space<vmem>>, vector<128x128xf32>
    %cst_53 = arith.constant dense<0.000000e+00> : vector<2x128xf32>
    %84 = tpu.matmul %82, %83, %cst_53 {dimension_numbers = #tpu.dot_dimension_numbers<[1], [0], [0], [1], [0, 0, 1, 1], [], []>} : vector<2x128xf32>, vector<128x128xf32>, vector<2x128xf32> -> vector<2x128xf32>
    %85 = vector.extract_strided_slice %84 {offsets = [0, 0], sizes = [1, 128], strides = [1, 1]} : vector<2x128xf32> to vector<1x128xf32>
    %cst_54 = arith.constant 0.001953125 : f32
    %86 = vector.broadcast %cst_54 : f32 to vector<1x128xf32>
    %87 = arith.mulf %85, %86 : vector<1x128xf32>
    %88 = vector.extract_strided_slice %84 {offsets = [1, 0], sizes = [1, 128], strides = [1, 1]} : vector<2x128xf32> to vector<1x128xf32>
    %cst_55 = arith.constant 0.001953125 : f32
    %89 = vector.broadcast %cst_55 : f32 to vector<1x128xf32>
    %90 = arith.mulf %88, %89 : vector<1x128xf32>
    %91 = arith.mulf %87, %87 : vector<1x128xf32>
    %92 = arith.subf %90, %91 : vector<1x128xf32>
    %cst_56 = arith.constant 0.000000e+00 : f32
    %93 = vector.broadcast %cst_56 : f32 to vector<1x128xf32>
    %94 = arith.maximumf %92, %93 : vector<1x128xf32>
    %c1_57 = arith.constant 1 : index
    %c0_58 = arith.constant 0 : index
    %c0_59 = arith.constant 0 : index
    %95 = vector.load %arg3[%c1_57, %c0_58, %c0_59] : memref<3x2x128xf32, #tpu.memory_space<vmem>>, vector<1x2x128xf32>
    %96 = vector.shape_cast %95 : vector<1x2x128xf32> to vector<2x128xf32>
    %97 = vector.extract_strided_slice %96 {offsets = [0, 0], sizes = [1, 128], strides = [1, 1]} : vector<2x128xf32> to vector<1x128xf32>
    %cst_60 = arith.constant 9.99999974E-6 : f32
    %98 = vector.broadcast %cst_60 : f32 to vector<1x128xf32>
    %99 = arith.addf %94, %98 : vector<1x128xf32>
    %100 = math.rsqrt %99 : vector<1x128xf32>
    %101 = arith.mulf %97, %100 : vector<1x128xf32>
    %102 = vector.extract_strided_slice %96 {offsets = [1, 0], sizes = [1, 128], strides = [1, 1]} : vector<2x128xf32> to vector<1x128xf32>
    %103 = arith.mulf %87, %101 : vector<1x128xf32>
    %104 = arith.subf %102, %103 : vector<1x128xf32>
    %105 = vector.broadcast %101 : vector<1x128xf32> to vector<32x128xf32>
    %106 = arith.mulf %76, %105 : vector<32x128xf32>
    %107 = vector.broadcast %104 : vector<1x128xf32> to vector<32x128xf32>
    %108 = arith.addf %106, %107 : vector<32x128xf32>
    %cst_61 = arith.constant 0.000000e+00 : f32
    %109 = vector.broadcast %cst_61 : f32 to vector<32x128xf32>
    %110 = arith.maximumf %108, %109 : vector<32x128xf32>
    %c1_i32_62 = arith.constant 1 : i32
    %111 = tpu.dynamic_rotate %110 by %c1_i32_62 dim 0 : vector<32x128xf32>, i32 -> vector<32x128xf32>
    %c0_63 = arith.constant 0 : index
    %c0_64 = arith.constant 0 : index
    %c0_65 = arith.constant 0 : index
    %112 = vector.load %arg1[%c0_63, %c0_64, %c0_65] : memref<2x32x1xf32, #tpu.memory_space<vmem>>, vector<1x32x1xf32>
    %113 = vector.shape_cast %112 : vector<1x32x1xf32> to vector<32x1xf32>
    %114 = vector.broadcast %113 : vector<32x1xf32> to vector<32x128xf32>
    %115 = arith.mulf %111, %114 : vector<32x128xf32>
    %c31_i32_66 = arith.constant 31 : i32
    %116 = tpu.dynamic_rotate %110 by %c31_i32_66 dim 0 : vector<32x128xf32>, i32 -> vector<32x128xf32>
    %c1_67 = arith.constant 1 : index
    %c0_68 = arith.constant 0 : index
    %c0_69 = arith.constant 0 : index
    %117 = vector.load %arg1[%c1_67, %c0_68, %c0_69] : memref<2x32x1xf32, #tpu.memory_space<vmem>>, vector<1x32x1xf32>
    %118 = vector.shape_cast %117 : vector<1x32x1xf32> to vector<32x1xf32>
    %119 = vector.broadcast %118 : vector<32x1xf32> to vector<32x128xf32>
    %120 = arith.mulf %116, %119 : vector<32x128xf32>
    %c0_70 = arith.constant 0 : index
    %c0_71 = arith.constant 0 : index
    %c0_72 = arith.constant 0 : index
    %121 = vector.load %arg6[%c0_70, %c0_71, %c0_72] : memref<3x128x128xf32, #tpu.memory_space<vmem>>, vector<1x128x128xf32>
    %122 = vector.shape_cast %121 : vector<1x128x128xf32> to vector<128x128xf32>
    %cst_73 = arith.constant dense<0.000000e+00> : vector<32x128xf32>
    %123 = tpu.matmul %115, %122, %cst_73 {dimension_numbers = #tpu.dot_dimension_numbers<[1], [0], [0], [1], [0, 0, 1, 1], [], []>} : vector<32x128xf32>, vector<128x128xf32>, vector<32x128xf32> -> vector<32x128xf32>
    %c1_74 = arith.constant 1 : index
    %c0_75 = arith.constant 0 : index
    %c0_76 = arith.constant 0 : index
    %124 = vector.load %arg6[%c1_74, %c0_75, %c0_76] : memref<3x128x128xf32, #tpu.memory_space<vmem>>, vector<1x128x128xf32>
    %125 = vector.shape_cast %124 : vector<1x128x128xf32> to vector<128x128xf32>
    %cst_77 = arith.constant dense<0.000000e+00> : vector<32x128xf32>
    %126 = tpu.matmul %110, %125, %cst_77 {dimension_numbers = #tpu.dot_dimension_numbers<[1], [0], [0], [1], [0, 0, 1, 1], [], []>} : vector<32x128xf32>, vector<128x128xf32>, vector<32x128xf32> -> vector<32x128xf32>
    %127 = arith.addf %123, %126 : vector<32x128xf32>
    %c2_78 = arith.constant 2 : index
    %c0_79 = arith.constant 0 : index
    %c0_80 = arith.constant 0 : index
    %128 = vector.load %arg6[%c2_78, %c0_79, %c0_80] : memref<3x128x128xf32, #tpu.memory_space<vmem>>, vector<1x128x128xf32>
    %129 = vector.shape_cast %128 : vector<1x128x128xf32> to vector<128x128xf32>
    %cst_81 = arith.constant dense<0.000000e+00> : vector<32x128xf32>
    %130 = tpu.matmul %120, %129, %cst_81 {dimension_numbers = #tpu.dot_dimension_numbers<[1], [0], [0], [1], [0, 0, 1, 1], [], []>} : vector<32x128xf32>, vector<128x128xf32>, vector<32x128xf32> -> vector<32x128xf32>
    %131 = arith.addf %127, %130 : vector<32x128xf32>
    %cst_82 = arith.constant dense<0.000000e+00> : vector<128xf32>
    %132 = vector.multi_reduction <add>, %131, %cst_82 [0] : vector<32x128xf32> to vector<128xf32>
    %133 = vector.shape_cast %132 : vector<128xf32> to vector<1x128xf32>
    %134 = arith.mulf %131, %131 : vector<32x128xf32>
    %cst_83 = arith.constant dense<0.000000e+00> : vector<128xf32>
    %135 = vector.multi_reduction <add>, %134, %cst_83 [0] : vector<32x128xf32> to vector<128xf32>
    %136 = vector.shape_cast %135 : vector<128xf32> to vector<1x128xf32>
    %137 = tpu.concatenate %133, %136 in 0 : vector<1x128xf32>, vector<1x128xf32> -> vector<2x128xf32>
    %c0_84 = arith.constant 0 : index
    %c0_85 = arith.constant 0 : index
    %138 = vector.load %arg2[%c0_84, %c0_85] : memref<128x128xf32, #tpu.memory_space<vmem>>, vector<128x128xf32>
    %cst_86 = arith.constant dense<0.000000e+00> : vector<2x128xf32>
    %139 = tpu.matmul %137, %138, %cst_86 {dimension_numbers = #tpu.dot_dimension_numbers<[1], [0], [0], [1], [0, 0, 1, 1], [], []>} : vector<2x128xf32>, vector<128x128xf32>, vector<2x128xf32> -> vector<2x128xf32>
    %140 = vector.extract_strided_slice %139 {offsets = [0, 0], sizes = [1, 128], strides = [1, 1]} : vector<2x128xf32> to vector<1x128xf32>
    %cst_87 = arith.constant 0.001953125 : f32
    %141 = vector.broadcast %cst_87 : f32 to vector<1x128xf32>
    %142 = arith.mulf %140, %141 : vector<1x128xf32>
    %143 = vector.extract_strided_slice %139 {offsets = [1, 0], sizes = [1, 128], strides = [1, 1]} : vector<2x128xf32> to vector<1x128xf32>
    %cst_88 = arith.constant 0.001953125 : f32
    %144 = vector.broadcast %cst_88 : f32 to vector<1x128xf32>
    %145 = arith.mulf %143, %144 : vector<1x128xf32>
    %146 = arith.mulf %142, %142 : vector<1x128xf32>
    %147 = arith.subf %145, %146 : vector<1x128xf32>
    %cst_89 = arith.constant 0.000000e+00 : f32
    %148 = vector.broadcast %cst_89 : f32 to vector<1x128xf32>
    %149 = arith.maximumf %147, %148 : vector<1x128xf32>
    %c2_90 = arith.constant 2 : index
    %c0_91 = arith.constant 0 : index
    %c0_92 = arith.constant 0 : index
    %150 = vector.load %arg3[%c2_90, %c0_91, %c0_92] : memref<3x2x128xf32, #tpu.memory_space<vmem>>, vector<1x2x128xf32>
    %151 = vector.shape_cast %150 : vector<1x2x128xf32> to vector<2x128xf32>
    %152 = vector.extract_strided_slice %151 {offsets = [0, 0], sizes = [1, 128], strides = [1, 1]} : vector<2x128xf32> to vector<1x128xf32>
    %cst_93 = arith.constant 9.99999974E-6 : f32
    %153 = vector.broadcast %cst_93 : f32 to vector<1x128xf32>
    %154 = arith.addf %149, %153 : vector<1x128xf32>
    %155 = math.rsqrt %154 : vector<1x128xf32>
    %156 = arith.mulf %152, %155 : vector<1x128xf32>
    %157 = vector.extract_strided_slice %151 {offsets = [1, 0], sizes = [1, 128], strides = [1, 1]} : vector<2x128xf32> to vector<1x128xf32>
    %158 = arith.mulf %142, %156 : vector<1x128xf32>
    %159 = arith.subf %157, %158 : vector<1x128xf32>
    %160 = vector.broadcast %156 : vector<1x128xf32> to vector<32x128xf32>
    %161 = arith.mulf %131, %160 : vector<32x128xf32>
    %162 = vector.broadcast %159 : vector<1x128xf32> to vector<32x128xf32>
    %163 = arith.addf %161, %162 : vector<32x128xf32>
    %cst_94 = arith.constant 0.000000e+00 : f32
    %164 = vector.broadcast %cst_94 : f32 to vector<32x128xf32>
    %165 = arith.maximumf %163, %164 : vector<32x128xf32>
    %c0_95 = arith.constant 0 : index
    %c0_96 = arith.constant 0 : index
    %166 = vector.load %arg7[%c0_95, %c0_96] : memref<32x128xf32, #tpu.memory_space<vmem>>, vector<32x128xf32>
    tpu.vector_store %arg7[%c0_95, %c0_96], %165 {strides = array<i32>} : memref<32x128xf32, #tpu.memory_space<vmem>>, vector<32x128xf32>,
    return
  }
}

</mosaic_0001>

<llo_original>
// kernel: tpu_custom_call.1
$region0: #{tpu_custom_call.1}
  #allocation0 [shape = 'u32[]', space=smem, size = 0x4, offset = 0x4, fixed_abs, tag = 'smem constant byte address 0x4 - core index']
  #allocation1 [shape = 'u32[144,128]{1,0:T(1,128)}', space=vmem, size = 0x12000, scoped, tag = 'internal scratch']
  %s0 = inlined_call_operand.vmem [shape: f32[32,64], index: 0, kind: input, shape index: {}]
  %s1 = inlined_call_operand.vmem [shape: f32[2,32,1], index: 1, kind: input, shape index: {}]
  %s2 = inlined_call_operand.hbm [shape: f32[128,128], index: 2, kind: input, shape index: {}]
  %s3 = inlined_call_operand.vmem [shape: f32[3,2,128], index: 3, kind: input, shape index: {}]
  %s4 = inlined_call_operand.hbm [shape: f32[3,64,128], index: 4, kind: input, shape index: {}]
  %s5 = inlined_call_operand.hbm [shape: f32[3,128,128], index: 5, kind: input, shape index: {}]
  %s6 = inlined_call_operand.hbm [shape: f32[3,128,128], index: 6, kind: input, shape index: {}]
  %s7 = inlined_call_operand.hbm [shape: f32[32,128], index: 7, kind: output, shape index: {}]
  %s8 = sld [smem:[#allocation0]]
  $region54: #{tpu_custom_call.1} parent=0
    _
  %s10 = ssub.s32 1, %s8
  %s11 = scalar_select 0, %s10, %s8
  $region1: #{tpu_custom_call.1} parent=0
    #allocation2 [shape = 'u8[65536]{0}', space=vmem, size = 0x10000, scoped, tag = 'input window, operand 2, single buffered']
    #allocation3 [shape = 's32[1]{0}', space=sflag, size = 0x4, scoped, tag = 'scoped memory for tpu_custom_call.1']
    #allocation4 [shape = 's32[1]{0}', space=sflag, size = 0x4, scoped, tag = 'scoped memory for tpu_custom_call.1']
    #allocation5 [shape = 'u8[98304]{0}', space=vmem, size = 0x18000, scoped, tag = 'input window, operand 4, single buffered']
    #allocation6 [shape = 's32[1]{0}', space=sflag, size = 0x4, scoped, tag = 'scoped memory for tpu_custom_call.1']
    #allocation7 [shape = 'u8[196608]{0}', space=vmem, size = 0x30000, scoped, tag = 'input window, operand 5, single buffered']
    #allocation8 [shape = 'u8[196608]{0}', space=vmem, size = 0x30000, scoped, tag = 'input window, operand 6, single buffered']
    #allocation9 [shape = 's32[1]{0}', space=sflag, size = 0x4, scoped, tag = 'scoped memory for tpu_custom_call.1']
    #allocation10 [shape = 'u8[16384]{0}', space=vmem, size = 0x4000, scoped, tag = 'output window, operand 0, single buffered']
    %12 = vsyncpa [#allocation3], 0
    %13 = vsyncpa [#allocation6], 0
    %14 = vsyncpa [#allocation9], 0
    %15 = vsyncpa [#allocation4], 0
    // Predicated region
    $region2: #{tpu_custom_call.1} parent=1 // pred_check
      _
    $region3: #{tpu_custom_call.1} parent=1 // pred_check_branch
      %17 = sbr.rel (0) target = $region5
    $region4: #{tpu_custom_call.1} parent=1 // pred_region
      _
    $region5: #{tpu_custom_call.1} parent=1 // pred_fallthru
      _
    // Predicated region
    $region6: #{tpu_custom_call.1} parent=1 // pred_check
      _
    $region7: #{tpu_custom_call.1} parent=1 // pred_check_branch
      %19 = sbr.rel (0) target = $region9
    $region8: #{tpu_custom_call.1} parent=1 // pred_region
      _
    $region9: #{tpu_custom_call.1} parent=1 // pred_fallthru
      _
    // Predicated region
    $region10: #{tpu_custom_call.1} parent=1 // pred_check
      _
    $region11: #{tpu_custom_call.1} parent=1 // pred_check_branch
      %21 = sbr.rel (0) target = $region13
    $region12: #{tpu_custom_call.1} parent=1 // pred_region
      %s23 = ssub.s32 2048, 2048
      %24 = vsyncadd [#allocation3], %s23
      %s25 = sshll.u32 [#allocation2], 4
      %s26 = int_to_ptr.vmem [resolvable:$true] %s25
      %31 = dma.hbm_to_vmem [thread:$0]  %s2, 2048, %s26, [#allocation3], 128, 128, 8
    $region13: #{tpu_custom_call.1} parent=1 // pred_fallthru
      _
    // Predicated region
    $region14: #{tpu_custom_call.1} parent=1 // pred_check
      _
    $region15: #{tpu_custom_call.1} parent=1 // pred_check_branch
      %33 = sbr.rel (0) target = $region17
    $region16: #{tpu_custom_call.1} parent=1 // pred_region
      _
    $region17: #{tpu_custom_call.1} parent=1 // pred_fallthru
      _
    // Predicated region
    $region18: #{tpu_custom_call.1} parent=1 // pred_check
      _
    $region19: #{tpu_custom_call.1} parent=1 // pred_check_branch
      %35 = sbr.rel (0) target = $region21
    $region20: #{tpu_custom_call.1} parent=1 // pred_region
      %s37 = ssub.s32 3072, 3072
      %38 = vsyncadd [#allocation6], %s37
      %s39 = sshll.u32 [#allocation5], 4
      %s40 = int_to_ptr.vmem [resolvable:$true] %s39
      %45 = dma.hbm_to_vmem [thread:$0]  %s4, 3072, %s40, [#allocation6], 128, 128, 8
    $region21: #{tpu_custom_call.1} parent=1 // pred_fallthru
      _
    // Predicated region
    $region22: #{tpu_custom_call.1} parent=1 // pred_check
      _
    $region23: #{tpu_custom_call.1} parent=1 // pred_check_branch
      %47 = sbr.rel (0) target = $region25
    $region24: #{tpu_custom_call.1} parent=1 // pred_region
      %s49 = ssub.s32 6144, 6144
      %50 = vsyncadd [#allocation6], %s49
      %s51 = sshll.u32 [#allocation7], 4
      %s52 = int_to_ptr.vmem [resolvable:$true] %s51
      %57 = dma.hbm_to_vmem [thread:$0]  %s5, 6144, %s52, [#allocation6], 128, 128, 8
    $region25: #{tpu_custom_call.1} parent=1 // pred_fallthru
      _
    // Predicated region
    $region26: #{tpu_custom_call.1} parent=1 // pred_check
      _
    $region27: #{tpu_custom_call.1} parent=1 // pred_check_branch
      %59 = sbr.rel (0) target = $region29
    $region28: #{tpu_custom_call.1} parent=1 // pred_region
      %s61 = ssub.s32 6144, 6144
      %62 = vsyncadd [#allocation9], %s61
      %s63 = sshll.u32 [#allocation8], 4
      %s64 = int_to_ptr.vmem [resolvable:$true] %s63
      %69 = dma.hbm_to_vmem [thread:$0]  %s6, 6144, %s64, [#allocation9], 128, 128, 8
    $region29: #{tpu_custom_call.1} parent=1 // pred_fallthru
      _
    // Predicated region
    $region30: #{tpu_custom_call.1} parent=1 // pred_check
      _
    $region31: #{tpu_custom_call.1} parent=1 // pred_check_branch
      %71 = sbr.rel (0) target = $region33
    $region32: #{tpu_custom_call.1} parent=1 // pred_region
      %72 = dma.done [#allocation3], 2048
    $region33: #{tpu_custom_call.1} parent=1 // pred_fallthru
      _
    // Predicated region
    $region34: #{tpu_custom_call.1} parent=1 // pred_check
      _
    $region35: #{tpu_custom_call.1} parent=1 // pred_check_branch
      %74 = sbr.rel (0) target = $region37
    $region36: #{tpu_custom_call.1} parent=1 // pred_region
      %75 = dma.done [#allocation6], 3072
    $region37: #{tpu_custom_call.1} parent=1 // pred_fallthru
      _
    // Predicated region
    $region38: #{tpu_custom_call.1} parent=1 // pred_check
      _
    $region39: #{tpu_custom_call.1} parent=1 // pred_check_branch
      %77 = sbr.rel (0) target = $region41
    $region40: #{tpu_custom_call.1} parent=1 // pred_region
      %78 = dma.done [#allocation6], 6144
    $region41: #{tpu_custom_call.1} parent=1 // pred_fallthru
      _
    // Predicated region
    $region42: #{tpu_custom_call.1} parent=1 // pred_check
      _
    $region43: #{tpu_custom_call.1} parent=1 // pred_check_branch
      %80 = sbr.rel (0) target = $region45
    $region44: #{tpu_custom_call.1} parent=1 // pred_region
      %81 = dma.done [#allocation9], 6144
    $region45: #{tpu_custom_call.1} parent=1 // pred_fallthru
      _
    %v82 = vld [vmem:[%s0] sm:$0xff]
    %v83 = vld [vmem:[%s0 + $0x8] sm:$0xff]
    %v84 = vld [vmem:[%s0 + $0x10] sm:$0xff]
    %v85 = vld [vmem:[%s0 + $0x18] sm:$0xff]
    %v86 = vrot.slane %v82, 7
    %v87 = vrot.slane %v83, 7
    %v88 = vrot.slane %v84, 7
    %v89 = vrot.slane %v85, 7
    %v90 = vlaneseq
    %v91 = vshrl.u32 %v90, 7
    %vm92 = vcmp.lt.s32.totalorder %v91, 1
    %v93 = vsel %vm92, %v88, %v89
    %v94 = vsel %vm92, %v87, %v88
    %v95 = vsel %vm92, %v86, %v87
    %v96 = vsel %vm92, %v89, %v86
    %v97 = vld [vmem:[%s1] sm:$0xff]
    %v98 = vld [vmem:[%s1 + $0x8] sm:$0xff]
    %v99 = vld [vmem:[%s1 + $0x10] sm:$0xff]
    %v100 = vld [vmem:[%s1 + $0x18] sm:$0xff]
    %102 = vset.pattern.permute.xlu0 0
    %103 = vperm.xlu0 %102, %v97
    %v104 = vpop.permute.xlu0 %103
    %107 = vset.pattern.permute.xlu0 0
    %108 = vperm.xlu0 %107, %v98
    %v109 = vpop.permute.xlu0 %108
    %112 = vset.pattern.permute.xlu0 0
    %113 = vperm.xlu0 %112, %v99
    %v114 = vpop.permute.xlu0 %113
    %117 = vset.pattern.permute.xlu0 0
    %118 = vperm.xlu0 %117, %v100
    %v119 = vpop.permute.xlu0 %118
    %v121 = vmul.f32 %v96, %v104
    %v122 = vmul.f32 %v95, %v109
    %v123 = vmul.f32 %v94, %v114
    %v124 = vmul.f32 %v93, %v119
    %v125 = vrot.slane %v82, 1
    %v126 = vrot.slane %v83, 1
    %v127 = vrot.slane %v84, 1
    %v128 = vrot.slane %v85, 1
    %vm129 = vcmp.lt.s32.totalorder %v91, 7
    %v130 = vsel %vm129, %v127, %v128
    %v131 = vsel %vm129, %v126, %v127
    %v132 = vsel %vm129, %v125, %v126
    %v133 = vsel %vm129, %v128, %v125
    %s134 = scalar_lea.vmem %s1, 32
    %v135 = vld [vmem:[%s134] sm:$0xff]
    %v136 = vld [vmem:[%s134 + $0x8] sm:$0xff]
    %v137 = vld [vmem:[%s134 + $0x10] sm:$0xff]
    %v138 = vld [vmem:[%s134 + $0x18] sm:$0xff]
    %140 = vset.pattern.permute.xlu0 0
    %141 = vperm.xlu0 %140, %v135
    %v142 = vpop.permute.xlu0 %141
    %145 = vset.pattern.permute.xlu0 0
    %146 = vperm.xlu0 %145, %v136
    %v147 = vpop.permute.xlu0 %146
    %150 = vset.pattern.permute.xlu0 0
    %151 = vperm.xlu0 %150, %v137
    %v152 = vpop.permute.xlu0 %151
    %155 = vset.pattern.permute.xlu0 0
    %156 = vperm.xlu0 %155, %v138
    %v157 = vpop.permute.xlu0 %156
    %v159 = vmul.f32 %v132, %v142
    %v160 = vmul.f32 %v131, %v147
    %v161 = vmul.f32 %v130, %v152
    %v162 = vmul.f32 %v133, %v157
    %v163 = vld [vmem:[#allocation5] sm:$0xff]
    %v164 = vld [vmem:[#allocation5 + $0x8] sm:$0xff]
    %v165 = vld [vmem:[#allocation5 + $0x10] sm:$0xff]
    %v166 = vld [vmem:[#allocation5 + $0x18] sm:$0xff]
    %v167 = vld [vmem:[#allocation5 + $0x20] sm:$0xff]
    %v168 = vld [vmem:[#allocation5 + $0x28] sm:$0xff]
    %v169 = vld [vmem:[#allocation5 + $0x30] sm:$0xff]
    %v170 = vld [vmem:[#allocation5 + $0x38] sm:$0xff]
    %s171 = scalar_lea.vmem [#allocation5], 64
    %v172 = vld [vmem:[%s171] sm:$0xff]
    %v173 = vld [vmem:[%s171 + $0x8] sm:$0xff]
    %v174 = vld [vmem:[%s171 + $0x10] sm:$0xff]
    %v175 = vld [vmem:[%s171 + $0x18] sm:$0xff]
    %v176 = vld [vmem:[%s171 + $0x20] sm:$0xff]
    %v177 = vld [vmem:[%s171 + $0x28] sm:$0xff]
    %v178 = vld [vmem:[%s171 + $0x30] sm:$0xff]
    %v179 = vld [vmem:[%s171 + $0x38] sm:$0xff]
    %vm180 = vcmask 523264
    %v182 = vsel %vm180, %v82, 0
    %v185 = vsel %vm180, %v83, 0
    %v188 = vsel %vm180, %v84, 0
    %v191 = vsel %vm180, %v85, 0
    %193 = vmatprep.subr.mxu0 0.0
    %194 = vmatpush1.msra.mxu0 %v172
    %195 = vmatprep.subr.mxu0 0.0
    %196 = vmatpush1.msra.mxu0 %v173
    %197 = vmatprep.subr.mxu0 0.0
    %198 = vmatpush1.msra.mxu0 %v174
    %199 = vmatprep.subr.mxu0 0.0
    %200 = vmatpush1.msra.mxu0 %v175
    %201 = vmatprep.subr.mxu0 0.0
    %202 = vmatpush1.msra.mxu0 %v176
    %203 = vmatprep.subr.mxu0 0.0
    %204 = vmatpush1.msra.mxu0 %v177
    %205 = vmatprep.subr.mxu0 0.0
    %206 = vmatpush1.msra.mxu0 %v178
    %207 = vmatprep.subr.mxu0 0.0
    %208 = vmatpush1.msra.mxu0 %v179
    %209 = vmatprep.subr.mxu0 0.0
    %210 = vmatpush1.msra.mxu0 0.0
    %211 = vmatprep.subr.mxu0 0.0
    %212 = vmatpush1.msra.mxu0 0.0
    %213 = vmatprep.subr.mxu0 0.0
    %214 = vmatpush1.msra.mxu0 0.0
    %215 = vmatprep.subr.mxu0 0.0
    %216 = vmatpush1.msra.mxu0 0.0
    %217 = vmatprep.subr.mxu0 0.0
    %218 = vmatpush1.msra.mxu0 0.0
    %219 = vmatprep.subr.mxu0 0.0
    %220 = vmatpush1.msra.mxu0 0.0
    %221 = vmatprep.subr.mxu0 0.0
    %222 = vmatpush1.msra.mxu0 0.0
    %223 = vmatprep.subr.mxu0 0.0
    %224 = vmatpush1.msra.mxu0 0.0
    %225 = vmatprep.subr.mxu0 0.0
    %226 = vmatpush1.msra.mxu0 0.0
    %227 = vmatprep.subr.mxu0 0.0
    %228 = vmatpush1.msra.mxu0 0.0
    %229 = vmatprep.subr.mxu0 0.0
    %230 = vmatpush1.msra.mxu0 0.0
    %231 = vmatprep.subr.mxu0 0.0
    %232 = vmatpush1.msra.mxu0 0.0
    %233 = vmatprep.subr.mxu0 0.0
    %234 = vmatpush1.msra.mxu0 0.0
    %235 = vmatprep.subr.mxu0 0.0
    %236 = vmatpush1.msra.mxu0 0.0
    %237 = vmatprep.subr.mxu0 0.0
    %238 = vmatpush1.msra.mxu0 0.0
    %239 = vmatprep.subr.mxu0 0.0
    %240 = vmatpush1.msra.mxu0 0.0
    %241 = vmatprep.subr.mxu0 0.0
    %242 = vmatpush1.msra.mxu0 0.0
    %243 = vmatprep.subr.mxu0 0.0
    %244 = vmatpush1.msra.mxu0 0.0
    %245 = vmatprep.subr.mxu0 0.0
    %246 = vmatpush1.msra.mxu0 0.0
    %247 = vmatprep.subr.mxu0 0.0
    %248 = vmatpush1.msra.mxu0 0.0
    %249 = vmatprep.subr.mxu0 0.0
    %250 = vmatpush1.msra.mxu0 0.0
    %251 = vmatprep.subr.mxu0 0.0
    %252 = vmatpush1.msra.mxu0 0.0
    %253 = vmatprep.subr.mxu0 0.0
    %254 = vmatpush1.msra.mxu0 0.0
    %255 = vmatprep.subr.mxu0 0.0
    %256 = vmatpush1.msra.mxu0 0.0
    %257 = vmatprep.mubr.f32.mxu0 0.0
    %258 = vmatmul.mubr.f32.gmra.mrb[0].mxu0 %v182
    %v259 = vpop.f32.mrb[0].mxu0
    %v260 = vadd.f32 0.0, %v259
    %v261 = vpop.f32.mrb[0].mxu0
    %262 = vmatprep.mubr.f32.mxu0 0.0
    %263 = vmatmul.mubr.f32.gmra.mrb[0].mxu0 %v185
    %v264 = vpop.f32.mrb[0].mxu0
    %v265 = vadd.f32 0.0, %v264
    %v266 = vpop.f32.mrb[0].mxu0
    %267 = vmatprep.mubr.f32.mxu0 0.0
    %268 = vmatmul.mubr.f32.gmra.mrb[0].mxu0 %v188
    %v269 = vpop.f32.mrb[0].mxu0
    %v270 = vadd.f32 0.0, %v269
    %v271 = vpop.f32.mrb[0].mxu0
    %272 = vmatprep.mubr.f32.mxu0 0.0
    %273 = vmatmul.mubr.f32.gmra.mrb[0].mxu0 %v191
    %v274 = vpop.f32.mrb[0].mxu0
    %v275 = vadd.f32 0.0, %v274
    %v276 = vpop.f32.mrb[0].mxu0
    %277 = vdwg.mxu0
    %v279 = vsel %vm180, %v121, 0
    %v282 = vsel %vm180, %v122, 0
    %v285 = vsel %vm180, %v123, 0
    %v288 = vsel %vm180, %v124, 0
    %290 = vmatprep.subr.mxu0 0.0
    %291 = vmatpush1.msra.mxu0 %v163
    %292 = vmatprep.subr.mxu0 0.0
    %293 = vmatpush1.msra.mxu0 %v164
    %294 = vmatprep.subr.mxu0 0.0
    %295 = vmatpush1.msra.mxu0 %v165
    %296 = vmatprep.subr.mxu0 0.0
    %297 = vmatpush1.msra.mxu0 %v166
    %298 = vmatprep.subr.mxu0 0.0
    %299 = vmatpush1.msra.mxu0 %v167
    %300 = vmatprep.subr.mxu0 0.0
    %301 = vmatpush1.msra.mxu0 %v168
    %302 = vmatprep.subr.mxu0 0.0
    %303 = vmatpush1.msra.mxu0 %v169
    %304 = vmatprep.subr.mxu0 0.0
    %305 = vmatpush1.msra.mxu0 %v170
    %306 = vmatprep.subr.mxu0 0.0
    %307 = vmatpush1.msra.mxu0 0.0
    %308 = vmatprep.subr.mxu0 0.0
    %309 = vmatpush1.msra.mxu0 0.0
    %310 = vmatprep.subr.mxu0 0.0
    %311 = vmatpush1.msra.mxu0 0.0
    %312 = vmatprep.subr.mxu0 0.0
    %313 = vmatpush1.msra.mxu0 0.0
    %314 = vmatprep.subr.mxu0 0.0
    %315 = vmatpush1.msra.mxu0 0.0
    %316 = vmatprep.subr.mxu0 0.0
    %317 = vmatpush1.msra.mxu0 0.0
    %318 = vmatprep.subr.mxu0 0.0
    %319 = vmatpush1.msra.mxu0 0.0
    %320 = vmatprep.subr.mxu0 0.0
    %321 = vmatpush1.msra.mxu0 0.0
    %322 = vmatprep.subr.mxu0 0.0
    %323 = vmatpush1.msra.mxu0 0.0
    %324 = vmatprep.subr.mxu0 0.0
    %325 = vmatpush1.msra.mxu0 0.0
    %326 = vmatprep.subr.mxu0 0.0
    %327 = vmatpush1.msra.mxu0 0.0
    %328 = vmatprep.subr.mxu0 0.0
    %329 = vmatpush1.msra.mxu0 0.0
    %330 = vmatprep.subr.mxu0 0.0
    %331 = vmatpush1.msra.mxu0 0.0
    %332 = vmatprep.subr.mxu0 0.0
    %333 = vmatpush1.msra.mxu0 0.0
    %334 = vmatprep.subr.mxu0 0.0
    %335 = vmatpush1.msra.mxu0 0.0
    %336 = vmatprep.subr.mxu0 0.0
    %337 = vmatpush1.msra.mxu0 0.0
    %338 = vmatprep.subr.mxu0 0.0
    %339 = vmatpush1.msra.mxu0 0.0
    %340 = vmatprep.subr.mxu0 0.0
    %341 = vmatpush1.msra.mxu0 0.0
    %342 = vmatprep.subr.mxu0 0.0
    %343 = vmatpush1.msra.mxu0 0.0
    %344 = vmatprep.subr.mxu0 0.0
    %345 = vmatpush1.msra.mxu0 0.0
    %346 = vmatprep.subr.mxu0 0.0
    %347 = vmatpush1.msra.mxu0 0.0
    %348 = vmatprep.subr.mxu0 0.0
    %349 = vmatpush1.msra.mxu0 0.0
    %350 = vmatprep.subr.mxu0 0.0
    %351 = vmatpush1.msra.mxu0 0.0
    %352 = vmatprep.subr.mxu0 0.0
    %353 = vmatpush1.msra.mxu0 0.0
    %354 = vmatprep.mubr.f32.mxu0 0.0
    %355 = vmatmul.mubr.f32.gmra.mrb[0].mxu0 %v279
    %v356 = vpop.f32.mrb[0].mxu0
    %v357 = vadd.f32 %v260, %v356
    %v358 = vpop.f32.mrb[0].mxu0
    %359 = vmatprep.mubr.f32.mxu0 0.0
    %360 = vmatmul.mubr.f32.gmra.mrb[0].mxu0 %v282
    %v361 = vpop.f32.mrb[0].mxu0
    %v362 = vadd.f32 %v265, %v361
    %v363 = vpop.f32.mrb[0].mxu0
    %364 = vmatprep.mubr.f32.mxu0 0.0
    %365 = vmatmul.mubr.f32.gmra.mrb[0].mxu0 %v285
    %v366 = vpop.f32.mrb[0].mxu0
    %v367 = vadd.f32 %v270, %v366
    %v368 = vpop.f32.mrb[0].mxu0
    %369 = vmatprep.mubr.f32.mxu0 0.0
    %370 = vmatmul.mubr.f32.gmra.mrb[0].mxu0 %v288
    %v371 = vpop.f32.mrb[0].mxu0
    %v372 = vadd.f32 %v275, %v371
    %v373 = vpop.f32.mrb[0].mxu0
    %374 = vdwg.mxu0
    %s375 = scalar_lea.vmem [#allocation5], 128
    %v376 = vld [vmem:[%s375] sm:$0xff]
    %v377 = vld [vmem:[%s375 + $0x8] sm:$0xff]
    %v378 = vld [vmem:[%s375 + $0x10] sm:$0xff]
    %v379 = vld [vmem:[%s375 + $0x18] sm:$0xff]
    %v380 = vld [vmem:[%s375 + $0x20] sm:$0xff]
    %v381 = vld [vmem:[%s375 + $0x28] sm:$0xff]
    %v382 = vld [vmem:[%s375 + $0x30] sm:$0xff]
    %v383 = vld [vmem:[%s375 + $0x38] sm:$0xff]
    %v385 = vsel %vm180, %v159, 0
    %v388 = vsel %vm180, %v160, 0
    %v391 = vsel %vm180, %v161, 0
    %v394 = vsel %vm180, %v162, 0
    %396 = vmatprep.subr.mxu0 0.0
    %397 = vmatpush1.msra.mxu0 %v376
    %398 = vmatprep.subr.mxu0 0.0
    %399 = vmatpush1.msra.mxu0 %v377
    %400 = vmatprep.subr.mxu0 0.0
    %401 = vmatpush1.msra.mxu0 %v378
    %402 = vmatprep.subr.mxu0 0.0
    %403 = vmatpush1.msra.mxu0 %v379
    %404 = vmatprep.subr.mxu0 0.0
    %405 = vmatpush1.msra.mxu0 %v380
    %406 = vmatprep.subr.mxu0 0.0
    %407 = vmatpush1.msra.mxu0 %v381
    %408 = vmatprep.subr.mxu0 0.0
    %409 = vmatpush1.msra.mxu0 %v382
    %410 = vmatprep.subr.mxu0 0.0
    %411 = vmatpush1.msra.mxu0 %v383
    %412 = vmatprep.subr.mxu0 0.0
    %413 = vmatpush1.msra.mxu0 0.0
    %414 = vmatprep.subr.mxu0 0.0
    %415 = vmatpush1.msra.mxu0 0.0
    %416 = vmatprep.subr.mxu0 0.0
    %417 = vmatpush1.msra.mxu0 0.0
    %418 = vmatprep.subr.mxu0 0.0
    %419 = vmatpush1.msra.mxu0 0.0
    %420 = vmatprep.subr.mxu0 0.0
    %421 = vmatpush1.msra.mxu0 0.0
    %422 = vmatprep.subr.mxu0 0.0
    %423 = vmatpush1.msra.mxu0 0.0
    %424 = vmatprep.subr.mxu0 0.0
    %425 = vmatpush1.msra.mxu0 0.0
    %426 = vmatprep.subr.mxu0 0.0
    %427 = vmatpush1.msra.mxu0 0.0
    %428 = vmatprep.subr.mxu0 0.0
    %429 = vmatpush1.msra.mxu0 0.0
    %430 = vmatprep.subr.mxu0 0.0
    %431 = vmatpush1.msra.mxu0 0.0
    %432 = vmatprep.subr.mxu0 0.0
    %433 = vmatpush1.msra.mxu0 0.0
    %434 = vmatprep.subr.mxu0 0.0
    %435 = vmatpush1.msra.mxu0 0.0
    %436 = vmatprep.subr.mxu0 0.0
    %437 = vmatpush1.msra.mxu0 0.0
    %438 = vmatprep.subr.mxu0 0.0
    %439 = vmatpush1.msra.mxu0 0.0
    %440 = vmatprep.subr.mxu0 0.0
    %441 = vmatpush1.msra.mxu0 0.0
    %442 = vmatprep.subr.mxu0 0.0
    %443 = vmatpush1.msra.mxu0 0.0
    %444 = vmatprep.subr.mxu0 0.0
    %445 = vmatpush1.msra.mxu0 0.0
    %446 = vmatprep.subr.mxu0 0.0
    %447 = vmatpush1.msra.mxu0 0.0
    %448 = vmatprep.subr.mxu0 0.0
    %449 = vmatpush1.msra.mxu0 0.0
    %450 = vmatprep.subr.mxu0 0.0
    %451 = vmatpush1.msra.mxu0 0.0
    %452 = vmatprep.subr.mxu0 0.0
    %453 = vmatpush1.msra.mxu0 0.0
    %454 = vmatprep.subr.mxu0 0.0
    %455 = vmatpush1.msra.mxu0 0.0
    %456 = vmatprep.subr.mxu0 0.0
    %457 = vmatpush1.msra.mxu0 0.0
    %458 = vmatprep.subr.mxu0 0.0
    %459 = vmatpush1.msra.mxu0 0.0
    %460 = vmatprep.mubr.f32.mxu0 0.0
    %461 = vmatmul.mubr.f32.gmra.mrb[0].mxu0 %v385
    %v462 = vpop.f32.mrb[0].mxu0
    %v463 = vadd.f32 0.0, %v462
    %v464 = vpop.f32.mrb[0].mxu0
    %465 = vmatprep.mubr.f32.mxu0 0.0
    %466 = vmatmul.mubr.f32.gmra.mrb[0].mxu0 %v388
    %v467 = vpop.f32.mrb[0].mxu0
    %v468 = vadd.f32 0.0, %v467
    %v469 = vpop.f32.mrb[0].mxu0
    %470 = vmatprep.mubr.f32.mxu0 0.0
    %471 = vmatmul.mubr.f32.gmra.mrb[0].mxu0 %v391
    %v472 = vpop.f32.mrb[0].mxu0
    %v473 = vadd.f32 0.0, %v472
    %v474 = vpop.f32.mrb[0].mxu0
    %475 = vmatprep.mubr.f32.mxu0 0.0
    %476 = vmatmul.mubr.f32.gmra.mrb[0].mxu0 %v394
    %v477 = vpop.f32.mrb[0].mxu0
    %v478 = vadd.f32 0.0, %v477
    %v479 = vpop.f32.mrb[0].mxu0
    %480 = vdwg.mxu0
    %v481 = vadd.f32 %v357, %v463
    %v482 = vadd.f32 %v362, %v468
    %v483 = vadd.f32 %v367, %v473
    %v484 = vadd.f32 %v372, %v478
    %v485 = vadd.f32 %v481, %v482
    %v486 = vadd.f32 %v485, %v483
    %v487 = vadd.f32 %v486, %v484
    %v488 = vrot.slane %v487, 4
    %v489 = vadd.f32 %v487, %v488
    %v490 = vrot.slane %v489, 2
    %v491 = vadd.f32 %v489, %v490
    %v492 = vrot.slane %v491, 1
    %v493 = vadd.f32 %v491, %v492
    %v494 = vmul.f32 %v481, %v481
    %v495 = vmul.f32 %v482, %v482
    %v496 = vmul.f32 %v483, %v483
    %v497 = vmul.f32 %v484, %v484
    %v498 = vadd.f32 %v494, %v495
    %v499 = vadd.f32 %v498, %v496
    %v500 = vadd.f32 %v499, %v497
    %v501 = vrot.slane %v500, 4
    %v502 = vadd.f32 %v500, %v501
    %v503 = vrot.slane %v502, 2
    %v504 = vadd.f32 %v502, %v503
    %v505 = vrot.slane %v504, 1
    %v506 = vadd.f32 %v504, %v505
    %vm507 = vcmask 1040384
    %v508 = vsel %vm507, %v493, %v506
    %v509 = vld [vmem:[#allocation2] sm:$0xff]
    %v510 = vld [vmem:[#allocation2 + $0x8] sm:$0xff]
    %v511 = vld [vmem:[#allocation2 + $0x10] sm:$0xff]
    %v512 = vld [vmem:[#allocation2 + $0x18] sm:$0xff]
    %v513 = vld [vmem:[#allocation2 + $0x20] sm:$0xff]
    %v514 = vld [vmem:[#allocation2 + $0x28] sm:$0xff]
    %v515 = vld [vmem:[#allocation2 + $0x30] sm:$0xff]
    %v516 = vld [vmem:[#allocation2 + $0x38] sm:$0xff]
    %v517 = vld [vmem:[#allocation2 + $0x40] sm:$0xff]
    %v518 = vld [vmem:[#allocation2 + $0x48] sm:$0xff]
    %v519 = vld [vmem:[#allocation2 + $0x50] sm:$0xff]
    %v520 = vld [vmem:[#allocation2 + $0x58] sm:$0xff]
    %v521 = vld [vmem:[#allocation2 + $0x60] sm:$0xff]
    %v522 = vld [vmem:[#allocation2 + $0x68] sm:$0xff]
    %v523 = vld [vmem:[#allocation2 + $0x70] sm:$0xff]
    %v524 = vld [vmem:[#allocation2 + $0x78] sm:$0xff]
    %525 = vmatprep.subr.mxu0 0.0
    %526 = vmatpush1.msra.mxu0 %v509
    %527 = vmatprep.subr.mxu0 0.0
    %528 = vmatpush1.msra.mxu0 %v510
    %529 = vmatprep.subr.mxu0 0.0
    %530 = vmatpush1.msra.mxu0 %v511
    %531 = vmatprep.subr.mxu0 0.0
    %532 = vmatpush1.msra.mxu0 %v512
    %533 = vmatprep.subr.mxu0 0.0
    %534 = vmatpush1.msra.mxu0 %v513
    %535 = vmatprep.subr.mxu0 0.0
    %536 = vmatpush1.msra.mxu0 %v514
    %537 = vmatprep.subr.mxu0 0.0
    %538 = vmatpush1.msra.mxu0 %v515
    %539 = vmatprep.subr.mxu0 0.0
    %540 = vmatpush1.msra.mxu0 %v516
    %541 = vmatprep.subr.mxu0 0.0
    %542 = vmatpush1.msra.mxu0 %v517
    %543 = vmatprep.subr.mxu0 0.0
    %544 = vmatpush1.msra.mxu0 %v518
    %545 = vmatprep.subr.mxu0 0.0
    %546 = vmatpush1.msra.mxu0 %v519
    %547 = vmatprep.subr.mxu0 0.0
    %548 = vmatpush1.msra.mxu0 %v520
    %549 = vmatprep.subr.mxu0 0.0
    %550 = vmatpush1.msra.mxu0 %v521
    %551 = vmatprep.subr.mxu0 0.0
    %552 = vmatpush1.msra.mxu0 %v522
    %553 = vmatprep.subr.mxu0 0.0
    %554 = vmatpush1.msra.mxu0 %v523
    %555 = vmatprep.subr.mxu0 0.0
    %556 = vmatpush1.msra.mxu0 %v524
    %557 = vmatprep.subr.mxu0 0.0
    %558 = vmatpush1.msra.mxu0 0.0
    %559 = vmatprep.subr.mxu0 0.0
    %560 = vmatpush1.msra.mxu0 0.0
    %561 = vmatprep.subr.mxu0 0.0
    %562 = vmatpush1.msra.mxu0 0.0
    %563 = vmatprep.subr.mxu0 0.0
    %564 = vmatpush1.msra.mxu0 0.0
    %565 = vmatprep.subr.mxu0 0.0
    %566 = vmatpush1.msra.mxu0 0.0
    %567 = vmatprep.subr.mxu0 0.0
    %568 = vmatpush1.msra.mxu0 0.0
    %569 = vmatprep.subr.mxu0 0.0
    %570 = vmatpush1.msra.mxu0 0.0
    %571 = vmatprep.subr.mxu0 0.0
    %572 = vmatpush1.msra.mxu0 0.0
    %573 = vmatprep.subr.mxu0 0.0
    %574 = vmatpush1.msra.mxu0 0.0
    %575 = vmatprep.subr.mxu0 0.0
    %576 = vmatpush1.msra.mxu0 0.0
    %577 = vmatprep.subr.mxu0 0.0
    %578 = vmatpush1.msra.mxu0 0.0
    %579 = vmatprep.subr.mxu0 0.0
    %580 = vmatpush1.msra.mxu0 0.0
    %581 = vmatprep.subr.mxu0 0.0
    %582 = vmatpush1.msra.mxu0 0.0
    %583 = vmatprep.subr.mxu0 0.0
    %584 = vmatpush1.msra.mxu0 0.0
    %585 = vmatprep.subr.mxu0 0.0
    %586 = vmatpush1.msra.mxu0 0.0
    %587 = vmatprep.subr.mxu0 0.0
    %588 = vmatpush1.msra.mxu0 0.0
    %589 = vmatprep.mubr.f32.mxu0 0.0
    %590 = vmatmul.mubr.f32.gmra.mrb[0].mxu0 %v508
    %v591 = vpop.f32.mrb[0].mxu0
    %v592 = vadd.f32 0.0, %v591
    %v593 = vpop.f32.mrb[0].mxu0
    %594 = vdwg.mxu0
    %v595 = vmul.f32 %v592, 0.001953125
    %v596 = vmul.f32 %v595, %v595
    %v598 = vrot.slane %v596, 7
    %v600 = vsub.f32 %v595, %v598
    %v601 = vmax.f32 %v600, 0.0
    %v602 = vld [vmem:[%s3] sm:$0x3]
    %v603 = vadd.f32 %v601, 1e-05
    %v604 = vrsqrt.pop %v603
    %v606 = vrot.slane %v604, 1
    %v608 = vmul.f32 %v602, %v606
    %v609 = vmul.f32 %v595, %v608
    %v611 = vrot.slane %v609, 7
    %v613 = vsub.f32 %v602, %v611
    %v614 = vlaneseq
    %v615 = vshrl.u32 %v614, 7
    %v616 = vsub.s32 0, %v615
    %v617 = vrot.slane %v608, %v616
    %v618 = vmul.f32 %v481, %v617
    %v619 = vmul.f32 %v482, %v617
    %v620 = vmul.f32 %v483, %v617
    %v621 = vmul.f32 %v484, %v617
    %v622 = vlaneseq
    %v623 = vshrl.u32 %v622, 7
    %v624 = vsub.s32 1, %v623
    %v625 = vrot.slane %v613, %v624
    %v626 = vadd.f32 %v618, %v625
    %v627 = vadd.f32 %v619, %v625
    %v628 = vadd.f32 %v620, %v625
    %v629 = vadd.f32 %v621, %v625
    %v630 = vmax.f32 %v626, 0.0
    %v631 = vmax.f32 %v627, 0.0
    %v632 = vmax.f32 %v628, 0.0
    %v633 = vmax.f32 %v629, 0.0
    %v634 = vrot.slane %v630, 7
    %v635 = vrot.slane %v631, 7
    %v636 = vrot.slane %v632, 7
    %v637 = vrot.slane %v633, 7
    %v638 = vsel %vm92, %v636, %v637
    %v639 = vsel %vm92, %v635, %v636
    %v640 = vsel %vm92, %v634, %v635
    %v641 = vsel %vm92, %v637, %v634
    %v642 = vmul.f32 %v641, %v104
    %v643 = vmul.f32 %v640, %v109
    %v644 = vmul.f32 %v639, %v114
    %v645 = vmul.f32 %v638, %v119
    %v646 = vrot.slane %v630, 1
    %v647 = vrot.slane %v631, 1
    %v648 = vrot.slane %v632, 1
    %v649 = vrot.slane %v633, 1
    %v650 = vsel %vm129, %v648, %v649
    %v651 = vsel %vm129, %v647, %v648
    %v652 = vsel %vm129, %v646, %v647
    %v653 = vsel %vm129, %v649, %v646
    %v654 = vmul.f32 %v652, %v142
    %v655 = vmul.f32 %v651, %v147
    %v656 = vmul.f32 %v650, %v152
    %v657 = vmul.f32 %v653, %v157
    %v658 = vld [vmem:[#allocation7] sm:$0xff]
    %v659 = vld [vmem:[#allocation7 + $0x8] sm:$0xff]
    %v660 = vld [vmem:[#allocation7 + $0x10] sm:$0xff]
    %v661 = vld [vmem:[#allocation7 + $0x18] sm:$0xff]
    %v662 = vld [vmem:[#allocation7 + $0x20] sm:$0xff]
    %v663 = vld [vmem:[#allocation7 + $0x28] sm:$0xff]
    %v664 = vld [vmem:[#allocation7 + $0x30] sm:$0xff]
    %v665 = vld [vmem:[#allocation7 + $0x38] sm:$0xff]
    %v666 = vld [vmem:[#allocation7 + $0x40] sm:$0xff]
    %v667 = vld [vmem:[#allocation7 + $0x48] sm:$0xff]
    %v668 = vld [vmem:[#allocation7 + $0x50] sm:$0xff]
    %v669 = vld [vmem:[#allocation7 + $0x58] sm:$0xff]
    %v670 = vld [vmem:[#allocation7 + $0x60] sm:$0xff]
    %v671 = vld [vmem:[#allocation7 + $0x68] sm:$0xff]
    %v672 = vld [vmem:[#allocation7 + $0x70] sm:$0xff]
    %v673 = vld [vmem:[#allocation7 + $0x78] sm:$0xff]
    %s674 = scalar_lea.vmem [#allocation7], 128
    %v675 = vld [vmem:[%s674] sm:$0xff]
    %v676 = vld [vmem:[%s674 + $0x8] sm:$0xff]
    %v677 = vld [vmem:[%s674 + $0x10] sm:$0xff]
    %v678 = vld [vmem:[%s674 + $0x18] sm:$0xff]
    %v679 = vld [vmem:[%s674 + $0x20] sm:$0xff]
    %v680 = vld [vmem:[%s674 + $0x28] sm:$0xff]
    %v681 = vld [vmem:[%s674 + $0x30] sm:$0xff]
    %v682 = vld [vmem:[%s674 + $0x38] sm:$0xff]
    %v683 = vld [vmem:[%s674 + $0x40] sm:$0xff]
    %v684 = vld [vmem:[%s674 + $0x48] sm:$0xff]
    %v685 = vld [vmem:[%s674 + $0x50] sm:$0xff]
    %v686 = vld [vmem:[%s674 + $0x58] sm:$0xff]
    %v687 = vld [vmem:[%s674 + $0x60] sm:$0xff]
    %v688 = vld [vmem:[%s674 + $0x68] sm:$0xff]
    %v689 = vld [vmem:[%s674 + $0x70] sm:$0xff]
    %v690 = vld [vmem:[%s674 + $0x78] sm:$0xff]
    %691 = vmatprep.subr.mxu0 0.0
    %692 = vmatpush1.msra.mxu0 %v675
    %693 = vmatprep.subr.mxu0 0.0
    %694 = vmatpush1.msra.mxu0 %v676
    %695 = vmatprep.subr.mxu0 0.0
    %696 = vmatpush1.msra.mxu0 %v677
    %697 = vmatprep.subr.mxu0 0.0
    %698 = vmatpush1.msra.mxu0 %v678
    %699 = vmatprep.subr.mxu0 0.0
    %700 = vmatpush1.msra.mxu0 %v679
    %701 = vmatprep.subr.mxu0 0.0
    %702 = vmatpush1.msra.mxu0 %v680
    %703 = vmatprep.subr.mxu0 0.0
    %704 = vmatpush1.msra.mxu0 %v681
    %705 = vmatprep.subr.mxu0 0.0
    %706 = vmatpush1.msra.mxu0 %v682
    %707 = vmatprep.subr.mxu0 0.0
    %708 = vmatpush1.msra.mxu0 %v683
    %709 = vmatprep.subr.mxu0 0.0
    %710 = vmatpush1.msra.mxu0 %v684
    %711 = vmatprep.subr.mxu0 0.0
    %712 = vmatpush1.msra.mxu0 %v685
    %713 = vmatprep.subr.mxu0 0.0
    %714 = vmatpush1.msra.mxu0 %v686
    %715 = vmatprep.subr.mxu0 0.0
    %716 = vmatpush1.msra.mxu0 %v687
    %717 = vmatprep.subr.mxu0 0.0
    %718 = vmatpush1.msra.mxu0 %v688
    %719 = vmatprep.subr.mxu0 0.0
    %720 = vmatpush1.msra.mxu0 %v689
    %721 = vmatprep.subr.mxu0 0.0
    %722 = vmatpush1.msra.mxu0 %v690
    %723 = vmatprep.subr.mxu0 0.0
    %724 = vmatpush1.msra.mxu0 0.0
    %725 = vmatprep.subr.mxu0 0.0
    %726 = vmatpush1.msra.mxu0 0.0
    %727 = vmatprep.subr.mxu0 0.0
    %728 = vmatpush1.msra.mxu0 0.0
    %729 = vmatprep.subr.mxu0 0.0
    %730 = vmatpush1.msra.mxu0 0.0
    %731 = vmatprep.subr.mxu0 0.0
    %732 = vmatpush1.msra.mxu0 0.0
    %733 = vmatprep.subr.mxu0 0.0
    %734 = vmatpush1.msra.mxu0 0.0
    %735 = vmatprep.subr.mxu0 0.0
    %736 = vmatpush1.msra.mxu0 0.0
    %737 = vmatprep.subr.mxu0 0.0
    %738 = vmatpush1.msra.mxu0 0.0
    %739 = vmatprep.subr.mxu0 0.0
    %740 = vmatpush1.msra.mxu0 0.0
    %741 = vmatprep.subr.mxu0 0.0
    %742 = vmatpush1.msra.mxu0 0.0
    %743 = vmatprep.subr.mxu0 0.0
    %744 = vmatpush1.msra.mxu0 0.0
    %745 = vmatprep.subr.mxu0 0.0
    %746 = vmatpush1.msra.mxu0 0.0
    %747 = vmatprep.subr.mxu0 0.0
    %748 = vmatpush1.msra.mxu0 0.0
    %749 = vmatprep.subr.mxu0 0.0
    %750 = vmatpush1.msra.mxu0 0.0
    %751 = vmatprep.subr.mxu0 0.0
    %752 = vmatpush1.msra.mxu0 0.0
    %753 = vmatprep.subr.mxu0 0.0
    %754 = vmatpush1.msra.mxu0 0.0
    %755 = vmatprep.mubr.f32.mxu0 0.0
    %756 = vmatmul.mubr.f32.gmra.mrb[0].mxu0 %v630
    %v757 = vpop.f32.mrb[0].mxu0
    %v758 = vadd.f32 0.0, %v757
    %v759 = vpop.f32.mrb[0].mxu0
    %760 = vmatprep.mubr.f32.mxu0 0.0
    %761 = vmatmul.mubr.f32.gmra.mrb[0].mxu0 %v631
    %v762 = vpop.f32.mrb[0].mxu0
    %v763 = vadd.f32 0.0, %v762
    %v764 = vpop.f32.mrb[0].mxu0
    %765 = vmatprep.mubr.f32.mxu0 0.0
    %766 = vmatmul.mubr.f32.gmra.mrb[0].mxu0 %v632
    %v767 = vpop.f32.mrb[0].mxu0
    %v768 = vadd.f32 0.0, %v767
    %v769 = vpop.f32.mrb[0].mxu0
    %770 = vmatprep.mubr.f32.mxu0 0.0
    %771 = vmatmul.mubr.f32.gmra.mrb[0].mxu0 %v633
    %v772 = vpop.f32.mrb[0].mxu0
    %v773 = vadd.f32 0.0, %v772
    %v774 = vpop.f32.mrb[0].mxu0
    %775 = vdwg.mxu0
    %776 = vmatprep.subr.mxu0 0.0
    %777 = vmatpush1.msra.mxu0 %v658
    %778 = vmatprep.subr.mxu0 0.0
    %779 = vmatpush1.msra.mxu0 %v659
    %780 = vmatprep.subr.mxu0 0.0
    %781 = vmatpush1.msra.mxu0 %v660
    %782 = vmatprep.subr.mxu0 0.0
    %783 = vmatpush1.msra.mxu0 %v661
    %784 = vmatprep.subr.mxu0 0.0
    %785 = vmatpush1.msra.mxu0 %v662
    %786 = vmatprep.subr.mxu0 0.0
    %787 = vmatpush1.msra.mxu0 %v663
    %788 = vmatprep.subr.mxu0 0.0
    %789 = vmatpush1.msra.mxu0 %v664
    %790 = vmatprep.subr.mxu0 0.0
    %791 = vmatpush1.msra.mxu0 %v665
    %792 = vmatprep.subr.mxu0 0.0
    %793 = vmatpush1.msra.mxu0 %v666
    %794 = vmatprep.subr.mxu0 0.0
    %795 = vmatpush1.msra.mxu0 %v667
    %796 = vmatprep.subr.mxu0 0.0
    %797 = vmatpush1.msra.mxu0 %v668
    %798 = vmatprep.subr.mxu0 0.0
    %799 = vmatpush1.msra.mxu0 %v669
    %800 = vmatprep.subr.mxu0 0.0
    %801 = vmatpush1.msra.mxu0 %v670
    %802 = vmatprep.subr.mxu0 0.0
    %803 = vmatpush1.msra.mxu0 %v671
    %804 = vmatprep.subr.mxu0 0.0
    %805 = vmatpush1.msra.mxu0 %v672
    %806 = vmatprep.subr.mxu0 0.0
    %807 = vmatpush1.msra.mxu0 %v673
    %808 = vmatprep.subr.mxu0 0.0
    %809 = vmatpush1.msra.mxu0 0.0
    %810 = vmatprep.subr.mxu0 0.0
    %811 = vmatpush1.msra.mxu0 0.0
    %812 = vmatprep.subr.mxu0 0.0
    %813 = vmatpush1.msra.mxu0 0.0
    %814 = vmatprep.subr.mxu0 0.0
    %815 = vmatpush1.msra.mxu0 0.0
    %816 = vmatprep.subr.mxu0 0.0
    %817 = vmatpush1.msra.mxu0 0.0
    %818 = vmatprep.subr.mxu0 0.0
    %819 = vmatpush1.msra.mxu0 0.0
    %820 = vmatprep.subr.mxu0 0.0
    %821 = vmatpush1.msra.mxu0 0.0
    %822 = vmatprep.subr.mxu0 0.0
    %823 = vmatpush1.msra.mxu0 0.0
    %824 = vmatprep.subr.mxu0 0.0
    %825 = vmatpush1.msra.mxu0 0.0
    %826 = vmatprep.subr.mxu0 0.0
    %827 = vmatpush1.msra.mxu0 0.0
    %828 = vmatprep.subr.mxu0 0.0
    %829 = vmatpush1.msra.mxu0 0.0
    %830 = vmatprep.subr.mxu0 0.0
    %831 = vmatpush1.msra.mxu0 0.0
    %832 = vmatprep.subr.mxu0 0.0
    %833 = vmatpush1.msra.mxu0 0.0
    %834 = vmatprep.subr.mxu0 0.0
    %835 = vmatpush1.msra.mxu0 0.0
    %836 = vmatprep.subr.mxu0 0.0
    %837 = vmatpush1.msra.mxu0 0.0
    %838 = vmatprep.subr.mxu0 0.0
    %839 = vmatpush1.msra.mxu0 0.0
    %840 = vmatprep.mubr.f32.mxu0 0.0
    %841 = vmatmul.mubr.f32.gmra.mrb[0].mxu0 %v642
    %v842 = vpop.f32.mrb[0].mxu0
    %v843 = vadd.f32 %v758, %v842
    %v844 = vpop.f32.mrb[0].mxu0
    %845 = vmatprep.mubr.f32.mxu0 0.0
    %846 = vmatmul.mubr.f32.gmra.mrb[0].mxu0 %v643
    %v847 = vpop.f32.mrb[0].mxu0
    %v848 = vadd.f32 %v763, %v847
    %v849 = vpop.f32.mrb[0].mxu0
    %850 = vmatprep.mubr.f32.mxu0 0.0
    %851 = vmatmul.mubr.f32.gmra.mrb[0].mxu0 %v644
    %v852 = vpop.f32.mrb[0].mxu0
    %v853 = vadd.f32 %v768, %v852
    %v854 = vpop.f32.mrb[0].mxu0
    %855 = vmatprep.mubr.f32.mxu0 0.0
    %856 = vmatmul.mubr.f32.gmra.mrb[0].mxu0 %v645
    %v857 = vpop.f32.mrb[0].mxu0
    %v858 = vadd.f32 %v773, %v857
    %v859 = vpop.f32.mrb[0].mxu0
    %860 = vdwg.mxu0
    %s861 = scalar_lea.vmem [#allocation7], 256
    %v862 = vld [vmem:[%s861] sm:$0xff]
    %v863 = vld [vmem:[%s861 + $0x8] sm:$0xff]
    %v864 = vld [vmem:[%s861 + $0x10] sm:$0xff]
    %v865 = vld [vmem:[%s861 + $0x18] sm:$0xff]
    %v866 = vld [vmem:[%s861 + $0x20] sm:$0xff]
    %v867 = vld [vmem:[%s861 + $0x28] sm:$0xff]
    %v868 = vld [vmem:[%s861 + $0x30] sm:$0xff]
    %v869 = vld [vmem:[%s861 + $0x38] sm:$0xff]
    %v870 = vld [vmem:[%s861 + $0x40] sm:$0xff]
    %v871 = vld [vmem:[%s861 + $0x48] sm:$0xff]
    %v872 = vld [vmem:[%s861 + $0x50] sm:$0xff]
    %v873 = vld [vmem:[%s861 + $0x58] sm:$0xff]
    %v874 = vld [vmem:[%s861 + $0x60] sm:$0xff]
    %v875 = vld [vmem:[%s861 + $0x68] sm:$0xff]
    %v876 = vld [vmem:[%s861 + $0x70] sm:$0xff]
    %v877 = vld [vmem:[%s861 + $0x78] sm:$0xff]
    %878 = vmatprep.subr.mxu0 0.0
    %879 = vmatpush1.msra.mxu0 %v862
    %880 = vmatprep.subr.mxu0 0.0
    %881 = vmatpush1.msra.mxu0 %v863
    %882 = vmatprep.subr.mxu0 0.0
    %883 = vmatpush1.msra.mxu0 %v864
    %884 = vmatprep.subr.mxu0 0.0
    %885 = vmatpush1.msra.mxu0 %v865
    %886 = vmatprep.subr.mxu0 0.0
    %887 = vmatpush1.msra.mxu0 %v866
    %888 = vmatprep.subr.mxu0 0.0
    %889 = vmatpush1.msra.mxu0 %v867
    %890 = vmatprep.subr.mxu0 0.0
    %891 = vmatpush1.msra.mxu0 %v868
    %892 = vmatprep.subr.mxu0 0.0
    %893 = vmatpush1.msra.mxu0 %v869
    %894 = vmatprep.subr.mxu0 0.0
    %895 = vmatpush1.msra.mxu0 %v870
    %896 = vmatprep.subr.mxu0 0.0
    %897 = vmatpush1.msra.mxu0 %v871
    %898 = vmatprep.subr.mxu0 0.0
    %899 = vmatpush1.msra.mxu0 %v872
    %900 = vmatprep.subr.mxu0 0.0
    %901 = vmatpush1.msra.mxu0 %v873
    %902 = vmatprep.subr.mxu0 0.0
    %903 = vmatpush1.msra.mxu0 %v874
    %904 = vmatprep.subr.mxu0 0.0
    %905 = vmatpush1.msra.mxu0 %v875
    %906 = vmatprep.subr.mxu0 0.0
    %907 = vmatpush1.msra.mxu0 %v876
    %908 = vmatprep.subr.mxu0 0.0
    %909 = vmatpush1.msra.mxu0 %v877
    %910 = vmatprep.subr.mxu0 0.0
    %911 = vmatpush1.msra.mxu0 0.0
    %912 = vmatprep.subr.mxu0 0.0
    %913 = vmatpush1.msra.mxu0 0.0
    %914 = vmatprep.subr.mxu0 0.0
    %915 = vmatpush1.msra.mxu0 0.0
    %916 = vmatprep.subr.mxu0 0.0
    %917 = vmatpush1.msra.mxu0 0.0
    %918 = vmatprep.subr.mxu0 0.0
    %919 = vmatpush1.msra.mxu0 0.0
    %920 = vmatprep.subr.mxu0 0.0
    %921 = vmatpush1.msra.mxu0 0.0
    %922 = vmatprep.subr.mxu0 0.0
    %923 = vmatpush1.msra.mxu0 0.0
    %924 = vmatprep.subr.mxu0 0.0
    %925 = vmatpush1.msra.mxu0 0.0
    %926 = vmatprep.subr.mxu0 0.0
    %927 = vmatpush1.msra.mxu0 0.0
    %928 = vmatprep.subr.mxu0 0.0
    %929 = vmatpush1.msra.mxu0 0.0
    %930 = vmatprep.subr.mxu0 0.0
    %931 = vmatpush1.msra.mxu0 0.0
    %932 = vmatprep.subr.mxu0 0.0
    %933 = vmatpush1.msra.mxu0 0.0
    %934 = vmatprep.subr.mxu0 0.0
    %935 = vmatpush1.msra.mxu0 0.0
    %936 = vmatprep.subr.mxu0 0.0
    %937 = vmatpush1.msra.mxu0 0.0
    %938 = vmatprep.subr.mxu0 0.0
    %939 = vmatpush1.msra.mxu0 0.0
    %940 = vmatprep.subr.mxu0 0.0
    %941 = vmatpush1.msra.mxu0 0.0
    %942 = vmatprep.mubr.f32.mxu0 0.0
    %943 = vmatmul.mubr.f32.gmra.mrb[0].mxu0 %v654
    %v944 = vpop.f32.mrb[0].mxu0
    %v945 = vadd.f32 0.0, %v944
    %v946 = vpop.f32.mrb[0].mxu0
    %947 = vmatprep.mubr.f32.mxu0 0.0
    %948 = vmatmul.mubr.f32.gmra.mrb[0].mxu0 %v655
    %v949 = vpop.f32.mrb[0].mxu0
    %v950 = vadd.f32 0.0, %v949
    %v951 = vpop.f32.mrb[0].mxu0
    %952 = vmatprep.mubr.f32.mxu0 0.0
    %953 = vmatmul.mubr.f32.gmra.mrb[0].mxu0 %v656
    %v954 = vpop.f32.mrb[0].mxu0
    %v955 = vadd.f32 0.0, %v954
    %v956 = vpop.f32.mrb[0].mxu0
    %957 = vmatprep.mubr.f32.mxu0 0.0
    %958 = vmatmul.mubr.f32.gmra.mrb[0].mxu0 %v657
    %v959 = vpop.f32.mrb[0].mxu0
    %v960 = vadd.f32 0.0, %v959
    %v961 = vpop.f32.mrb[0].mxu0
    %962 = vdwg.mxu0
    %v963 = vadd.f32 %v843, %v945
    %v964 = vadd.f32 %v848, %v950
    %v965 = vadd.f32 %v853, %v955
    %v966 = vadd.f32 %v858, %v960
    %v967 = vadd.f32 %v963, %v964
    %v968 = vadd.f32 %v967, %v965
    %v969 = vadd.f32 %v968, %v966
    %v970 = vrot.slane %v969, 4
    %v971 = vadd.f32 %v969, %v970
    %v972 = vrot.slane %v971, 2
    %v973 = vadd.f32 %v971, %v972
    %v974 = vrot.slane %v973, 1
    %v975 = vadd.f32 %v973, %v974
    %v976 = vmul.f32 %v963, %v963
    %v977 = vmul.f32 %v964, %v964
    %v978 = vmul.f32 %v965, %v965
    %v979 = vmul.f32 %v966, %v966
    %v980 = vadd.f32 %v976, %v977
    %v981 = vadd.f32 %v980, %v978
    %v982 = vadd.f32 %v981, %v979
    %v983 = vrot.slane %v982, 4
    %v984 = vadd.f32 %v982, %v983
    %v985 = vrot.slane %v984, 2
    %v986 = vadd.f32 %v984, %v985
    %v987 = vrot.slane %v986, 1
    %v988 = vadd.f32 %v986, %v987
    %v989 = vsel %vm507, %v975, %v988
    %990 = vmatprep.subr.mxu0 0.0
    %991 = vmatpush1.msra.mxu0 %v509
    %992 = vmatprep.subr.mxu0 0.0
    %993 = vmatpush1.msra.mxu0 %v510
    %994 = vmatprep.subr.mxu0 0.0
    %995 = vmatpush1.msra.mxu0 %v511
    %996 = vmatprep.subr.mxu0 0.0
    %997 = vmatpush1.msra.mxu0 %v512
    %998 = vmatprep.subr.mxu0 0.0
    %999 = vmatpush1.msra.mxu0 %v513
    %1000 = vmatprep.subr.mxu0 0.0
    %1001 = vmatpush1.msra.mxu0 %v514
    %1002 = vmatprep.subr.mxu0 0.0
    %1003 = vmatpush1.msra.mxu0 %v515
    %1004 = vmatprep.subr.mxu0 0.0
    %1005 = vmatpush1.msra.mxu0 %v516
    %1006 = vmatprep.subr.mxu0 0.0
    %1007 = vmatpush1.msra.mxu0 %v517
    %1008 = vmatprep.subr.mxu0 0.0
    %1009 = vmatpush1.msra.mxu0 %v518
    %1010 = vmatprep.subr.mxu0 0.0
    %1011 = vmatpush1.msra.mxu0 %v519
    %1012 = vmatprep.subr.mxu0 0.0
    %1013 = vmatpush1.msra.mxu0 %v520
    %1014 = vmatprep.subr.mxu0 0.0
    %1015 = vmatpush1.msra.mxu0 %v521
    %1016 = vmatprep.subr.mxu0 0.0
    %1017 = vmatpush1.msra.mxu0 %v522
    %1018 = vmatprep.subr.mxu0 0.0
    %1019 = vmatpush1.msra.mxu0 %v523
    %1020 = vmatprep.subr.mxu0 0.0
    %1021 = vmatpush1.msra.mxu0 %v524
    %1022 = vmatprep.subr.mxu0 0.0
    %1023 = vmatpush1.msra.mxu0 0.0
    %1024 = vmatprep.subr.mxu0 0.0
    %1025 = vmatpush1.msra.mxu0 0.0
    %1026 = vmatprep.subr.mxu0 0.0
    %1027 = vmatpush1.msra.mxu0 0.0
    %1028 = vmatprep.subr.mxu0 0.0
    %1029 = vmatpush1.msra.mxu0 0.0
    %1030 = vmatprep.subr.mxu0 0.0
    %1031 = vmatpush1.msra.mxu0 0.0
    %1032 = vmatprep.subr.mxu0 0.0
    %1033 = vmatpush1.msra.mxu0 0.0
    %1034 = vmatprep.subr.mxu0 0.0
    %1035 = vmatpush1.msra.mxu0 0.0
    %1036 = vmatprep.subr.mxu0 0.0
    %1037 = vmatpush1.msra.mxu0 0.0
    %1038 = vmatprep.subr.mxu0 0.0
    %1039 = vmatpush1.msra.mxu0 0.0
    %1040 = vmatprep.subr.mxu0 0.0
    %1041 = vmatpush1.msra.mxu0 0.0
    %1042 = vmatprep.subr.mxu0 0.0
    %1043 = vmatpush1.msra.mxu0 0.0
    %1044 = vmatprep.subr.mxu0 0.0
    %1045 = vmatpush1.msra.mxu0 0.0
    %1046 = vmatprep.subr.mxu0 0.0
    %1047 = vmatpush1.msra.mxu0 0.0
    %1048 = vmatprep.subr.mxu0 0.0
    %1049 = vmatpush1.msra.mxu0 0.0
    %1050 = vmatprep.subr.mxu0 0.0
    %1051 = vmatpush1.msra.mxu0 0.0
    %1052 = vmatprep.subr.mxu0 0.0
    %1053 = vmatpush1.msra.mxu0 0.0
    %1054 = vmatprep.mubr.f32.mxu0 0.0
    %1055 = vmatmul.mubr.f32.gmra.mrb[0].mxu0 %v989
    %v1056 = vpop.f32.mrb[0].mxu0
    %v1057 = vadd.f32 0.0, %v1056
    %v1058 = vpop.f32.mrb[0].mxu0
    %1059 = vdwg.mxu0
    %v1060 = vmul.f32 %v1057, 0.001953125
    %v1061 = vmul.f32 %v1060, %v1060
    %v1063 = vrot.slane %v1061, 7
    %v1065 = vsub.f32 %v1060, %v1063
    %v1066 = vmax.f32 %v1065, 0.0
    %s1067 = scalar_lea.vmem %s3, 2
    %v1068 = vld [vmem:[%s1067] sm:$0x3]
    %v1069 = vadd.f32 %v1066, 1e-05
    %v1070 = vrsqrt.pop %v1069
    %v1072 = vrot.slane %v1070, 1
    %v1074 = vmul.f32 %v1068, %v1072
    %v1075 = vmul.f32 %v1060, %v1074
    %v1077 = vrot.slane %v1075, 7
    %v1079 = vsub.f32 %v1068, %v1077
    %v1080 = vlaneseq
    %v1081 = vshrl.u32 %v1080, 7
    %v1082 = vsub.s32 0, %v1081
    %v1083 = vrot.slane %v1074, %v1082
    %v1084 = vmul.f32 %v963, %v1083
    %v1085 = vmul.f32 %v964, %v1083
    %v1086 = vmul.f32 %v965, %v1083
    %v1087 = vmul.f32 %v966, %v1083
    %v1088 = vlaneseq
    %v1089 = vshrl.u32 %v1088, 7
    %v1090 = vsub.s32 1, %v1089
    %v1091 = vrot.slane %v1079, %v1090
    %v1092 = vadd.f32 %v1084, %v1091
    %v1093 = vadd.f32 %v1085, %v1091
    %v1094 = vadd.f32 %v1086, %v1091
    %v1095 = vadd.f32 %v1087, %v1091
    %v1096 = vmax.f32 %v1092, 0.0
    %v1097 = vmax.f32 %v1093, 0.0
    %v1098 = vmax.f32 %v1094, 0.0
    %v1099 = vmax.f32 %v1095, 0.0
    %v1100 = vrot.slane %v1096, 7
    %v1101 = vrot.slane %v1097, 7
    %v1102 = vrot.slane %v1098, 7
    %v1103 = vrot.slane %v1099, 7
    %v1104 = vsel %vm92, %v1102, %v1103
    %v1105 = vsel %vm92, %v1101, %v1102
    %v1106 = vsel %vm92, %v1100, %v1101
    %v1107 = vsel %vm92, %v1103, %v1100
    %v1108 = vmul.f32 %v1107, %v104
    %v1109 = vmul.f32 %v1106, %v109
    %v1110 = vmul.f32 %v1105, %v114
    %v1111 = vmul.f32 %v1104, %v119
    %v1112 = vrot.slane %v1096, 1
    %v1113 = vrot.slane %v1097, 1
    %v1114 = vrot.slane %v1098, 1
    %v1115 = vrot.slane %v1099, 1
    %v1116 = vsel %vm129, %v1114, %v1115
    %v1117 = vsel %vm129, %v1113, %v1114
    %v1118 = vsel %vm129, %v1112, %v1113
    %v1119 = vsel %vm129, %v1115, %v1112
    %v1120 = vmul.f32 %v1118, %v142
    %v1121 = vmul.f32 %v1117, %v147
    %v1122 = vmul.f32 %v1116, %v152
    %v1123 = vmul.f32 %v1119, %v157
    %v1124 = vld [vmem:[#allocation8] sm:$0xff]
    %v1125 = vld [vmem:[#allocation8 + $0x8] sm:$0xff]
    %v1126 = vld [vmem:[#allocation8 + $0x10] sm:$0xff]
    %v1127 = vld [vmem:[#allocation8 + $0x18] sm:$0xff]
    %v1128 = vld [vmem:[#allocation8 + $0x20] sm:$0xff]
    %v1129 = vld [vmem:[#allocation8 + $0x28] sm:$0xff]
    %v1130 = vld [vmem:[#allocation8 + $0x30] sm:$0xff]
    %v1131 = vld [vmem:[#allocation8 + $0x38] sm:$0xff]
    %v1132 = vld [vmem:[#allocation8 + $0x40] sm:$0xff]
    %v1133 = vld [vmem:[#allocation8 + $0x48] sm:$0xff]
    %v1134 = vld [vmem:[#allocation8 + $0x50] sm:$0xff]
    %v1135 = vld [vmem:[#allocation8 + $0x58] sm:$0xff]
    %v1136 = vld [vmem:[#allocation8 + $0x60] sm:$0xff]
    %v1137 = vld [vmem:[#allocation8 + $0x68] sm:$0xff]
    %v1138 = vld [vmem:[#allocation8 + $0x70] sm:$0xff]
    %v1139 = vld [vmem:[#allocation8 + $0x78] sm:$0xff]
    %s1140 = scalar_lea.vmem [#allocation8], 128
    %v1141 = vld [vmem:[%s1140] sm:$0xff]
    %v1142 = vld [vmem:[%s1140 + $0x8] sm:$0xff]
    %v1143 = vld [vmem:[%s1140 + $0x10] sm:$0xff]
    %v1144 = vld [vmem:[%s1140 + $0x18] sm:$0xff]
    %v1145 = vld [vmem:[%s1140 + $0x20] sm:$0xff]
    %v1146 = vld [vmem:[%s1140 + $0x28] sm:$0xff]
    %v1147 = vld [vmem:[%s1140 + $0x30] sm:$0xff]
    %v1148 = vld [vmem:[%s1140 + $0x38] sm:$0xff]
    %v1149 = vld [vmem:[%s1140 + $0x40] sm:$0xff]
    %v1150 = vld [vmem:[%s1140 + $0x48] sm:$0xff]
    %v1151 = vld [vmem:[%s1140 + $0x50] sm:$0xff]
    %v1152 = vld [vmem:[%s1140 + $0x58] sm:$0xff]
    %v1153 = vld [vmem:[%s1140 + $0x60] sm:$0xff]
    %v1154 = vld [vmem:[%s1140 + $0x68] sm:$0xff]
    %v1155 = vld [vmem:[%s1140 + $0x70] sm:$0xff]
    %v1156 = vld [vmem:[%s1140 + $0x78] sm:$0xff]
    %1157 = vmatprep.subr.mxu0 0.0
    %1158 = vmatpush1.msra.mxu0 %v1141
    %1159 = vmatprep.subr.mxu0 0.0
    %1160 = vmatpush1.msra.mxu0 %v1142
    %1161 = vmatprep.subr.mxu0 0.0
    %1162 = vmatpush1.msra.mxu0 %v1143
    %1163 = vmatprep.subr.mxu0 0.0
    %1164 = vmatpush1.msra.mxu0 %v1144
    %1165 = vmatprep.subr.mxu0 0.0
    %1166 = vmatpush1.msra.mxu0 %v1145
    %1167 = vmatprep.subr.mxu0 0.0
    %1168 = vmatpush1.msra.mxu0 %v1146
    %1169 = vmatprep.subr.mxu0 0.0
    %1170 = vmatpush1.msra.mxu0 %v1147
    %1171 = vmatprep.subr.mxu0 0.0
    %1172 = vmatpush1.msra.mxu0 %v1148
    %1173 = vmatprep.subr.mxu0 0.0
    %1174 = vmatpush1.msra.mxu0 %v1149
    %1175 = vmatprep.subr.mxu0 0.0
    %1176 = vmatpush1.msra.mxu0 %v1150
    %1177 = vmatprep.subr.mxu0 0.0
    %1178 = vmatpush1.msra.mxu0 %v1151
    %1179 = vmatprep.subr.mxu0 0.0
    %1180 = vmatpush1.msra.mxu0 %v1152
    %1181 = vmatprep.subr.mxu0 0.0
    %1182 = vmatpush1.msra.mxu0 %v1153
    %1183 = vmatprep.subr.mxu0 0.0
    %1184 = vmatpush1.msra.mxu0 %v1154
    %1185 = vmatprep.subr.mxu0 0.0
    %1186 = vmatpush1.msra.mxu0 %v1155
    %1187 = vmatprep.subr.mxu0 0.0
    %1188 = vmatpush1.msra.mxu0 %v1156
    %1189 = vmatprep.subr.mxu0 0.0
    %1190 = vmatpush1.msra.mxu0 0.0
    %1191 = vmatprep.subr.mxu0 0.0
    %1192 = vmatpush1.msra.mxu0 0.0
    %1193 = vmatprep.subr.mxu0 0.0
    %1194 = vmatpush1.msra.mxu0 0.0
    %1195 = vmatprep.subr.mxu0 0.0
    %1196 = vmatpush1.msra.mxu0 0.0
    %1197 = vmatprep.subr.mxu0 0.0
    %1198 = vmatpush1.msra.mxu0 0.0
    %1199 = vmatprep.subr.mxu0 0.0
    %1200 = vmatpush1.msra.mxu0 0.0
    %1201 = vmatprep.subr.mxu0 0.0
    %1202 = vmatpush1.msra.mxu0 0.0
    %1203 = vmatprep.subr.mxu0 0.0
    %1204 = vmatpush1.msra.mxu0 0.0
    %1205 = vmatprep.subr.mxu0 0.0
    %1206 = vmatpush1.msra.mxu0 0.0
    %1207 = vmatprep.subr.mxu0 0.0
    %1208 = vmatpush1.msra.mxu0 0.0
    %1209 = vmatprep.subr.mxu0 0.0
    %1210 = vmatpush1.msra.mxu0 0.0
    %1211 = vmatprep.subr.mxu0 0.0
    %1212 = vmatpush1.msra.mxu0 0.0
    %1213 = vmatprep.subr.mxu0 0.0
    %1214 = vmatpush1.msra.mxu0 0.0
    %1215 = vmatprep.subr.mxu0 0.0
    %1216 = vmatpush1.msra.mxu0 0.0
    %1217 = vmatprep.subr.mxu0 0.0
    %1218 = vmatpush1.msra.mxu0 0.0
    %1219 = vmatprep.subr.mxu0 0.0
    %1220 = vmatpush1.msra.mxu0 0.0
    %1221 = vmatprep.mubr.f32.mxu0 0.0
    %1222 = vmatmul.mubr.f32.gmra.mrb[0].mxu0 %v1096
    %v1223 = vpop.f32.mrb[0].mxu0
    %v1224 = vadd.f32 0.0, %v1223
    %v1225 = vpop.f32.mrb[0].mxu0
    %1226 = vmatprep.mubr.f32.mxu0 0.0
    %1227 = vmatmul.mubr.f32.gmra.mrb[0].mxu0 %v1097
    %v1228 = vpop.f32.mrb[0].mxu0
    %v1229 = vadd.f32 0.0, %v1228
    %v1230 = vpop.f32.mrb[0].mxu0
    %1231 = vmatprep.mubr.f32.mxu0 0.0
    %1232 = vmatmul.mubr.f32.gmra.mrb[0].mxu0 %v1098
    %v1233 = vpop.f32.mrb[0].mxu0
    %v1234 = vadd.f32 0.0, %v1233
    %v1235 = vpop.f32.mrb[0].mxu0
    %1236 = vmatprep.mubr.f32.mxu0 0.0
    %1237 = vmatmul.mubr.f32.gmra.mrb[0].mxu0 %v1099
    %v1238 = vpop.f32.mrb[0].mxu0
    %v1239 = vadd.f32 0.0, %v1238
    %v1240 = vpop.f32.mrb[0].mxu0
    %1241 = vdwg.mxu0
    %1242 = vmatprep.subr.mxu0 0.0
    %1243 = vmatpush1.msra.mxu0 %v1124
    %1244 = vmatprep.subr.mxu0 0.0
    %1245 = vmatpush1.msra.mxu0 %v1125
    %1246 = vmatprep.subr.mxu0 0.0
    %1247 = vmatpush1.msra.mxu0 %v1126
    %1248 = vmatprep.subr.mxu0 0.0
    %1249 = vmatpush1.msra.mxu0 %v1127
    %1250 = vmatprep.subr.mxu0 0.0
    %1251 = vmatpush1.msra.mxu0 %v1128
    %1252 = vmatprep.subr.mxu0 0.0
    %1253 = vmatpush1.msra.mxu0 %v1129
    %1254 = vmatprep.subr.mxu0 0.0
    %1255 = vmatpush1.msra.mxu0 %v1130
    %1256 = vmatprep.subr.mxu0 0.0
    %1257 = vmatpush1.msra.mxu0 %v1131
    %1258 = vmatprep.subr.mxu0 0.0
    %1259 = vmatpush1.msra.mxu0 %v1132
    %1260 = vmatprep.subr.mxu0 0.0
    %1261 = vmatpush1.msra.mxu0 %v1133
    %1262 = vmatprep.subr.mxu0 0.0
    %1263 = vmatpush1.msra.mxu0 %v1134
    %1264 = vmatprep.subr.mxu0 0.0
    %1265 = vmatpush1.msra.mxu0 %v1135
    %1266 = vmatprep.subr.mxu0 0.0
    %1267 = vmatpush1.msra.mxu0 %v1136
    %1268 = vmatprep.subr.mxu0 0.0
    %1269 = vmatpush1.msra.mxu0 %v1137
    %1270 = vmatprep.subr.mxu0 0.0
    %1271 = vmatpush1.msra.mxu0 %v1138
    %1272 = vmatprep.subr.mxu0 0.0
    %1273 = vmatpush1.msra.mxu0 %v1139
    %1274 = vmatprep.subr.mxu0 0.0
    %1275 = vmatpush1.msra.mxu0 0.0
    %1276 = vmatprep.subr.mxu0 0.0
    %1277 = vmatpush1.msra.mxu0 0.0
    %1278 = vmatprep.subr.mxu0 0.0
    %1279 = vmatpush1.msra.mxu0 0.0
    %1280 = vmatprep.subr.mxu0 0.0
    %1281 = vmatpush1.msra.mxu0 0.0
    %1282 = vmatprep.subr.mxu0 0.0
    %1283 = vmatpush1.msra.mxu0 0.0
    %1284 = vmatprep.subr.mxu0 0.0
    %1285 = vmatpush1.msra.mxu0 0.0
    %1286 = vmatprep.subr.mxu0 0.0
    %1287 = vmatpush1.msra.mxu0 0.0
    %1288 = vmatprep.subr.mxu0 0.0
    %1289 = vmatpush1.msra.mxu0 0.0
    %1290 = vmatprep.subr.mxu0 0.0
    %1291 = vmatpush1.msra.mxu0 0.0
    %1292 = vmatprep.subr.mxu0 0.0
    %1293 = vmatpush1.msra.mxu0 0.0
    %1294 = vmatprep.subr.mxu0 0.0
    %1295 = vmatpush1.msra.mxu0 0.0
    %1296 = vmatprep.subr.mxu0 0.0
    %1297 = vmatpush1.msra.mxu0 0.0
    %1298 = vmatprep.subr.mxu0 0.0
    %1299 = vmatpush1.msra.mxu0 0.0
    %1300 = vmatprep.subr.mxu0 0.0
    %1301 = vmatpush1.msra.mxu0 0.0
    %1302 = vmatprep.subr.mxu0 0.0
    %1303 = vmatpush1.msra.mxu0 0.0
    %1304 = vmatprep.subr.mxu0 0.0
    %1305 = vmatpush1.msra.mxu0 0.0
    %1306 = vmatprep.mubr.f32.mxu0 0.0
    %1307 = vmatmul.mubr.f32.gmra.mrb[0].mxu0 %v1108
    %v1308 = vpop.f32.mrb[0].mxu0
    %v1309 = vadd.f32 %v1224, %v1308
    %v1310 = vpop.f32.mrb[0].mxu0
    %1311 = vmatprep.mubr.f32.mxu0 0.0
    %1312 = vmatmul.mubr.f32.gmra.mrb[0].mxu0 %v1109
    %v1313 = vpop.f32.mrb[0].mxu0
    %v1314 = vadd.f32 %v1229, %v1313
    %v1315 = vpop.f32.mrb[0].mxu0
    %1316 = vmatprep.mubr.f32.mxu0 0.0
    %1317 = vmatmul.mubr.f32.gmra.mrb[0].mxu0 %v1110
    %v1318 = vpop.f32.mrb[0].mxu0
    %v1319 = vadd.f32 %v1234, %v1318
    %v1320 = vpop.f32.mrb[0].mxu0
    %1321 = vmatprep.mubr.f32.mxu0 0.0
    %1322 = vmatmul.mubr.f32.gmra.mrb[0].mxu0 %v1111
    %v1323 = vpop.f32.mrb[0].mxu0
    %v1324 = vadd.f32 %v1239, %v1323
    %v1325 = vpop.f32.mrb[0].mxu0
    %1326 = vdwg.mxu0
    %s1327 = scalar_lea.vmem [#allocation8], 256
    %v1328 = vld [vmem:[%s1327] sm:$0xff]
    %v1329 = vld [vmem:[%s1327 + $0x8] sm:$0xff]
    %v1330 = vld [vmem:[%s1327 + $0x10] sm:$0xff]
    %v1331 = vld [vmem:[%s1327 + $0x18] sm:$0xff]
    %v1332 = vld [vmem:[%s1327 + $0x20] sm:$0xff]
    %v1333 = vld [vmem:[%s1327 + $0x28] sm:$0xff]
    %v1334 = vld [vmem:[%s1327 + $0x30] sm:$0xff]
    %v1335 = vld [vmem:[%s1327 + $0x38] sm:$0xff]
    %v1336 = vld [vmem:[%s1327 + $0x40] sm:$0xff]
    %v1337 = vld [vmem:[%s1327 + $0x48] sm:$0xff]
    %v1338 = vld [vmem:[%s1327 + $0x50] sm:$0xff]
    %v1339 = vld [vmem:[%s1327 + $0x58] sm:$0xff]
    %v1340 = vld [vmem:[%s1327 + $0x60] sm:$0xff]
    %v1341 = vld [vmem:[%s1327 + $0x68] sm:$0xff]
    %v1342 = vld [vmem:[%s1327 + $0x70] sm:$0xff]
    %v1343 = vld [vmem:[%s1327 + $0x78] sm:$0xff]
    %1344 = vmatprep.subr.mxu0 0.0
    %1345 = vmatpush1.msra.mxu0 %v1328
    %1346 = vmatprep.subr.mxu0 0.0
    %1347 = vmatpush1.msra.mxu0 %v1329
    %1348 = vmatprep.subr.mxu0 0.0
    %1349 = vmatpush1.msra.mxu0 %v1330
    %1350 = vmatprep.subr.mxu0 0.0
    %1351 = vmatpush1.msra.mxu0 %v1331
    %1352 = vmatprep.subr.mxu0 0.0
    %1353 = vmatpush1.msra.mxu0 %v1332
    %1354 = vmatprep.subr.mxu0 0.0
    %1355 = vmatpush1.msra.mxu0 %v1333
    %1356 = vmatprep.subr.mxu0 0.0
    %1357 = vmatpush1.msra.mxu0 %v1334
    %1358 = vmatprep.subr.mxu0 0.0
    %1359 = vmatpush1.msra.mxu0 %v1335
    %1360 = vmatprep.subr.mxu0 0.0
    %1361 = vmatpush1.msra.mxu0 %v1336
    %1362 = vmatprep.subr.mxu0 0.0
    %1363 = vmatpush1.msra.mxu0 %v1337
    %1364 = vmatprep.subr.mxu0 0.0
    %1365 = vmatpush1.msra.mxu0 %v1338
    %1366 = vmatprep.subr.mxu0 0.0
    %1367 = vmatpush1.msra.mxu0 %v1339
    %1368 = vmatprep.subr.mxu0 0.0
    %1369 = vmatpush1.msra.mxu0 %v1340
    %1370 = vmatprep.subr.mxu0 0.0
    %1371 = vmatpush1.msra.mxu0 %v1341
    %1372 = vmatprep.subr.mxu0 0.0
    %1373 = vmatpush1.msra.mxu0 %v1342
    %1374 = vmatprep.subr.mxu0 0.0
    %1375 = vmatpush1.msra.mxu0 %v1343
    %1376 = vmatprep.subr.mxu0 0.0
    %1377 = vmatpush1.msra.mxu0 0.0
    %1378 = vmatprep.subr.mxu0 0.0
    %1379 = vmatpush1.msra.mxu0 0.0
    %1380 = vmatprep.subr.mxu0 0.0
    %1381 = vmatpush1.msra.mxu0 0.0
    %1382 = vmatprep.subr.mxu0 0.0
    %1383 = vmatpush1.msra.mxu0 0.0
    %1384 = vmatprep.subr.mxu0 0.0
    %1385 = vmatpush1.msra.mxu0 0.0
    %1386 = vmatprep.subr.mxu0 0.0
    %1387 = vmatpush1.msra.mxu0 0.0
    %1388 = vmatprep.subr.mxu0 0.0
    %1389 = vmatpush1.msra.mxu0 0.0
    %1390 = vmatprep.subr.mxu0 0.0
    %1391 = vmatpush1.msra.mxu0 0.0
    %1392 = vmatprep.subr.mxu0 0.0
    %1393 = vmatpush1.msra.mxu0 0.0
    %1394 = vmatprep.subr.mxu0 0.0
    %1395 = vmatpush1.msra.mxu0 0.0
    %1396 = vmatprep.subr.mxu0 0.0
    %1397 = vmatpush1.msra.mxu0 0.0
    %1398 = vmatprep.subr.mxu0 0.0
    %1399 = vmatpush1.msra.mxu0 0.0
    %1400 = vmatprep.subr.mxu0 0.0
    %1401 = vmatpush1.msra.mxu0 0.0
    %1402 = vmatprep.subr.mxu0 0.0
    %1403 = vmatpush1.msra.mxu0 0.0
    %1404 = vmatprep.subr.mxu0 0.0
    %1405 = vmatpush1.msra.mxu0 0.0
    %1406 = vmatprep.subr.mxu0 0.0
    %1407 = vmatpush1.msra.mxu0 0.0
    %1408 = vmatprep.mubr.f32.mxu0 0.0
    %1409 = vmatmul.mubr.f32.gmra.mrb[0].mxu0 %v1120
    %v1410 = vpop.f32.mrb[0].mxu0
    %v1411 = vadd.f32 0.0, %v1410
    %v1412 = vpop.f32.mrb[0].mxu0
    %1413 = vmatprep.mubr.f32.mxu0 0.0
    %1414 = vmatmul.mubr.f32.gmra.mrb[0].mxu0 %v1121
    %v1415 = vpop.f32.mrb[0].mxu0
    %v1416 = vadd.f32 0.0, %v1415
    %v1417 = vpop.f32.mrb[0].mxu0
    %1418 = vmatprep.mubr.f32.mxu0 0.0
    %1419 = vmatmul.mubr.f32.gmra.mrb[0].mxu0 %v1122
    %v1420 = vpop.f32.mrb[0].mxu0
    %v1421 = vadd.f32 0.0, %v1420
    %v1422 = vpop.f32.mrb[0].mxu0
    %1423 = vmatprep.mubr.f32.mxu0 0.0
    %1424 = vmatmul.mubr.f32.gmra.mrb[0].mxu0 %v1123
    %v1425 = vpop.f32.mrb[0].mxu0
    %v1426 = vadd.f32 0.0, %v1425
    %v1427 = vpop.f32.mrb[0].mxu0
    %1428 = vdwg.mxu0
    %v1429 = vadd.f32 %v1309, %v1411
    %v1430 = vadd.f32 %v1314, %v1416
    %v1431 = vadd.f32 %v1319, %v1421
    %v1432 = vadd.f32 %v1324, %v1426
    %v1433 = vadd.f32 %v1429, %v1430
    %v1434 = vadd.f32 %v1433, %v1431
    %v1435 = vadd.f32 %v1434, %v1432
    %v1436 = vrot.slane %v1435, 4
    %v1437 = vadd.f32 %v1435, %v1436
    %v1438 = vrot.slane %v1437, 2
    %v1439 = vadd.f32 %v1437, %v1438
    %v1440 = vrot.slane %v1439, 1
    %v1441 = vadd.f32 %v1439, %v1440
    %v1442 = vmul.f32 %v1429, %v1429
    %v1443 = vmul.f32 %v1430, %v1430
    %v1444 = vmul.f32 %v1431, %v1431
    %v1445 = vmul.f32 %v1432, %v1432
    %v1446 = vadd.f32 %v1442, %v1443
    %v1447 = vadd.f32 %v1446, %v1444
    %v1448 = vadd.f32 %v1447, %v1445
    %v1449 = vrot.slane %v1448, 4
    %v1450 = vadd.f32 %v1448, %v1449
    %v1451 = vrot.slane %v1450, 2
    %v1452 = vadd.f32 %v1450, %v1451
    %v1453 = vrot.slane %v1452, 1
    %v1454 = vadd.f32 %v1452, %v1453
    %v1455 = vsel %vm507, %v1441, %v1454
    %1456 = vmatprep.subr.mxu0 0.0
    %1457 = vmatpush1.msra.mxu0 %v509
    %1458 = vmatprep.subr.mxu0 0.0
    %1459 = vmatpush1.msra.mxu0 %v510
    %1460 = vmatprep.subr.mxu0 0.0
    %1461 = vmatpush1.msra.mxu0 %v511
    %1462 = vmatprep.subr.mxu0 0.0
    %1463 = vmatpush1.msra.mxu0 %v512
    %1464 = vmatprep.subr.mxu0 0.0
    %1465 = vmatpush1.msra.mxu0 %v513
    %1466 = vmatprep.subr.mxu0 0.0
    %1467 = vmatpush1.msra.mxu0 %v514
    %1468 = vmatprep.subr.mxu0 0.0
    %1469 = vmatpush1.msra.mxu0 %v515
    %1470 = vmatprep.subr.mxu0 0.0
    %1471 = vmatpush1.msra.mxu0 %v516
    %1472 = vmatprep.subr.mxu0 0.0
    %1473 = vmatpush1.msra.mxu0 %v517
    %1474 = vmatprep.subr.mxu0 0.0
    %1475 = vmatpush1.msra.mxu0 %v518
    %1476 = vmatprep.subr.mxu0 0.0
    %1477 = vmatpush1.msra.mxu0 %v519
    %1478 = vmatprep.subr.mxu0 0.0
    %1479 = vmatpush1.msra.mxu0 %v520
    %1480 = vmatprep.subr.mxu0 0.0
    %1481 = vmatpush1.msra.mxu0 %v521
    %1482 = vmatprep.subr.mxu0 0.0
    %1483 = vmatpush1.msra.mxu0 %v522
    %1484 = vmatprep.subr.mxu0 0.0
    %1485 = vmatpush1.msra.mxu0 %v523
    %1486 = vmatprep.subr.mxu0 0.0
    %1487 = vmatpush1.msra.mxu0 %v524
    %1488 = vmatprep.subr.mxu0 0.0
    %1489 = vmatpush1.msra.mxu0 0.0
    %1490 = vmatprep.subr.mxu0 0.0
    %1491 = vmatpush1.msra.mxu0 0.0
    %1492 = vmatprep.subr.mxu0 0.0
    %1493 = vmatpush1.msra.mxu0 0.0
    %1494 = vmatprep.subr.mxu0 0.0
    %1495 = vmatpush1.msra.mxu0 0.0
    %1496 = vmatprep.subr.mxu0 0.0
    %1497 = vmatpush1.msra.mxu0 0.0
    %1498 = vmatprep.subr.mxu0 0.0
    %1499 = vmatpush1.msra.mxu0 0.0
    %1500 = vmatprep.subr.mxu0 0.0
    %1501 = vmatpush1.msra.mxu0 0.0
    %1502 = vmatprep.subr.mxu0 0.0
    %1503 = vmatpush1.msra.mxu0 0.0
    %1504 = vmatprep.subr.mxu0 0.0
    %1505 = vmatpush1.msra.mxu0 0.0
    %1506 = vmatprep.subr.mxu0 0.0
    %1507 = vmatpush1.msra.mxu0 0.0
    %1508 = vmatprep.subr.mxu0 0.0
    %1509 = vmatpush1.msra.mxu0 0.0
    %1510 = vmatprep.subr.mxu0 0.0
    %1511 = vmatpush1.msra.mxu0 0.0
    %1512 = vmatprep.subr.mxu0 0.0
    %1513 = vmatpush1.msra.mxu0 0.0
    %1514 = vmatprep.subr.mxu0 0.0
    %1515 = vmatpush1.msra.mxu0 0.0
    %1516 = vmatprep.subr.mxu0 0.0
    %1517 = vmatpush1.msra.mxu0 0.0
    %1518 = vmatprep.subr.mxu0 0.0
    %1519 = vmatpush1.msra.mxu0 0.0
    %1520 = vmatprep.mubr.f32.mxu0 0.0
    %1521 = vmatmul.mubr.f32.gmra.mrb[0].mxu0 %v1455
    %v1522 = vpop.f32.mrb[0].mxu0
    %v1523 = vadd.f32 0.0, %v1522
    %v1524 = vpop.f32.mrb[0].mxu0
    %1525 = vdwg.mxu0
    %v1526 = vmul.f32 %v1523, 0.001953125
    %v1527 = vmul.f32 %v1526, %v1526
    %v1529 = vrot.slane %v1527, 7
    %v1531 = vsub.f32 %v1526, %v1529
    %v1532 = vmax.f32 %v1531, 0.0
    %s1533 = scalar_lea.vmem %s3, 4
    %v1534 = vld [vmem:[%s1533] sm:$0x3]
    %v1535 = vadd.f32 %v1532, 1e-05
    %v1536 = vrsqrt.pop %v1535
    %v1538 = vrot.slane %v1536, 1
    %v1540 = vmul.f32 %v1534, %v1538
    %v1541 = vmul.f32 %v1526, %v1540
    %v1543 = vrot.slane %v1541, 7
    %v1545 = vsub.f32 %v1534, %v1543
    %v1546 = vlaneseq
    %v1547 = vshrl.u32 %v1546, 7
    %v1548 = vsub.s32 0, %v1547
    %v1549 = vrot.slane %v1540, %v1548
    %v1550 = vmul.f32 %v1429, %v1549
    %v1551 = vmul.f32 %v1430, %v1549
    %v1552 = vmul.f32 %v1431, %v1549
    %v1553 = vmul.f32 %v1432, %v1549
    %v1554 = vlaneseq
    %v1555 = vshrl.u32 %v1554, 7
    %v1556 = vsub.s32 1, %v1555
    %v1557 = vrot.slane %v1545, %v1556
    %v1558 = vadd.f32 %v1550, %v1557
    %v1559 = vadd.f32 %v1551, %v1557
    %v1560 = vadd.f32 %v1552, %v1557
    %v1561 = vadd.f32 %v1553, %v1557
    %v1562 = vmax.f32 %v1558, 0.0
    %v1563 = vmax.f32 %v1559, 0.0
    %v1564 = vmax.f32 %v1560, 0.0
    %v1565 = vmax.f32 %v1561, 0.0
    %1566 = vst [vmem:[#allocation10] sm:$0xff] %v1562
    %1567 = vst [vmem:[#allocation10 + $0x8] sm:$0xff] %v1563
    %1568 = vst [vmem:[#allocation10 + $0x10] sm:$0xff] %v1564
    %1569 = vst [vmem:[#allocation10 + $0x18] sm:$0xff] %v1565
    // Predicated region
    $region46: #{tpu_custom_call.1} parent=1 // pred_check
      _
    $region47: #{tpu_custom_call.1} parent=1 // pred_check_branch
      %1571 = sbr.rel (0) target = $region49
    $region48: #{tpu_custom_call.1} parent=1 // pred_region
      %s1573 = ssub.s32 512, 512
      %1574 = vsyncadd [#allocation4], %s1573
      %s1575 = sshll.u32 [#allocation10], 4
      %s1576 = int_to_ptr.vmem [resolvable:$true] %s1575
      %1581 = dma.vmem_to_hbm [thread:$0]  %s1576, 512, %s7, [#allocation4], 128, 128, 8
    $region49: #{tpu_custom_call.1} parent=1 // pred_fallthru
      _
    // Predicated region
    $region50: #{tpu_custom_call.1} parent=1 // pred_check
      _
    $region51: #{tpu_custom_call.1} parent=1 // pred_check_branch
      %1583 = sbr.rel (0) target = $region53
    $region52: #{tpu_custom_call.1} parent=1 // pred_region
      %1584 = dma.done [#allocation4], 512
    $region53: #{tpu_custom_call.1} parent=1 // pred_fallthru
      _
    %1585 = vsyncpa [#allocation3], 1
    %1586 = vsyncpa [#allocation6], 1
    %1587 = vsyncpa [#allocation9], 1
    %1588 = vsyncpa [#allocation4], 1

</llo_original>
